<compile_context>
chip_gen: v7x
topology: tpu7x:2x2x1
jax: 0.10.0
libtpu: 0.0.40
codegen_flags: <defaults>
</compile_context>

<pallas_src>
import functools

import jax
import jax.numpy as jnp
from jax import lax
from jax.experimental import pallas as pl
from jax.experimental.pallas import tpu as pltpu

_PAD = 8  # sublane-aligned left halo offset along W in the padded hidden scratch


# ---------------------------------------------------------------------------
# Fused Pallas kernel: expand 1x1 + BN + ReLU -> depthwise 3x3 + BN + ReLU
#                      -> (stride-2 subsample) -> project 1x1 + BN (+ residual)
# ---------------------------------------------------------------------------

def _mbconv_kernel(*refs, H, W, stride, has_expand, use_residual):
    if has_expand:
        (x_ref, w_exp_ref, b_exp_ref, w_dw_ref, b_dw_ref,
         w_pr_ref, b_pr_ref, o_ref, hid_ref) = refs
    else:
        (x_ref, w_dw_ref, b_dw_ref, w_pr_ref, b_pr_ref, o_ref, hid_ref) = refs

    Ch = hid_ref.shape[-1]
    x2d = x_ref[0]                                    # (H*W, Cin), NHWC flattened

    # ---- expand 1x1 conv (BN scale pre-folded into weights) + bias + ReLU (MXU) ----
    if has_expand:
        hid2d = jnp.dot(x2d, w_exp_ref[...], preferred_element_type=jnp.float32)
        hid2d = jnp.maximum(hid2d + b_exp_ref[...], 0.0)
    else:
        hid2d = x2d.astype(jnp.float32)

    # ---- depthwise 3x3: halo handled entirely in VMEM (no jnp.pad, no HBM copy) ----
    hid_ref[...] = jnp.zeros_like(hid_ref)            # zero border (and interior, cheap)
    hid_ref[pl.ds(1, H), pl.ds(_PAD, W), :] = hid2d.reshape(H, W, Ch)

    xp = hid_ref[...]                                 # (H+2, W+2*_PAD, Ch) padded hidden
    w_dw = w_dw_ref[...].astype(jnp.float32)          # (3, 3, Ch)
    acc = jnp.zeros((H, W, Ch), jnp.float32)
    for ki in range(3):
        for kj in range(3):
            c0 = _PAD - 1 + kj
            acc = acc + xp[ki:ki + H, c0:c0 + W, :] * w_dw[ki, kj]   # per-channel VPU
    dw2d = jnp.maximum(acc.reshape(H * W, Ch) + b_dw_ref[...], 0.0)

    w_pr = w_pr_ref[...]
    b_pr = b_pr_ref[...]
    if stride == 1:
        # ---- project 1x1 + bias, residual fused, single lane-dense store ----
        y = jnp.dot(dw2d, w_pr, preferred_element_type=jnp.float32) + b_pr
        if use_residual:
            y = y + x2d.astype(jnp.float32)
        o_ref[0] = y.astype(o_ref.dtype)
    else:
        # ---- stride-2: subsample even rows/cols in VMEM, project only survivors ----
        # The full-resolution depthwise output never touches HBM.
        # TODO(synk): for large spatial extents, read only the even taps (strided
        # pl.ds loads) instead of stride-1 depthwise + per-row selection matmul.
        Ho, Wo = H // 2, W // 2
        a = lax.broadcasted_iota(jnp.int32, (Wo, W), 0)
        b = lax.broadcasted_iota(jnp.int32, (Wo, W), 1)
        col_sel = (b == 2 * a).astype(jnp.float32)    # (Wo, W): picks even columns
        for i in range(Ho):
            row = dw2d[2 * i * W:(2 * i + 1) * W, :]                  # image row 2*i
            row = jnp.dot(col_sel, row, preferred_element_type=jnp.float32)
            y = jnp.dot(row, w_pr, preferred_element_type=jnp.float32) + b_pr
            o_ref[0, pl.ds(i * Wo, Wo), :] = y.astype(o_ref.dtype)


# ---------------------------------------------------------------------------
# Wrapper around pallas_call
# ---------------------------------------------------------------------------

def inverted_residual(x_nchw, params, *, stride, expand_ratio, residual=True):
    """Forward pass equivalent of the PyTorch InvertedResidual module (eval mode)."""
    assert stride in (1, 2)
    # TODO(synk): when chaining several blocks, keep activations NHWC end-to-end and
    # drop these per-block NCHW<->NHWC transposes.
    x = jnp.transpose(x_nchw, (0, 2, 3, 1))           # NCHW -> NHWC (channels on lanes)
    N, H, W, Cin = x.shape
    has_expand = expand_ratio != 1
    Ch = params["w_dw"].shape[-1]
    Cout = params["w_proj"].shape[1]
    use_residual = (stride == 1) and (Cin == Cout) and residual
    if stride == 2:
        assert H % 2 == 0 and W % 2 == 0, "stride-2 path assumes even H, W"
        Ho, Wo = H // 2, W // 2
    else:
        Ho, Wo = H, W

    x_flat = x.reshape(N, H * W, Cin)                 # free row-major reshape

    kernel = functools.partial(_mbconv_kernel, H=H, W=W, stride=stride,
                               has_expand=has_expand, use_residual=use_residual)

    in_specs = [pl.BlockSpec((1, H * W, Cin), lambda n: (n, 0, 0))]
    args = [x_flat]
    if has_expand:
        in_specs += [pl.BlockSpec((Cin, Ch), lambda n: (0, 0)),
                     pl.BlockSpec((1, Ch), lambda n: (0, 0))]
        args += [params["w_exp"], params["b_exp"].reshape(1, Ch)]
    in_specs += [pl.BlockSpec((3, 3, Ch), lambda n: (0, 0, 0)),
                 pl.BlockSpec((1, Ch), lambda n: (0, 0)),
                 pl.BlockSpec((Ch, Cout), lambda n: (0, 0)),
                 pl.BlockSpec((1, Cout), lambda n: (0, 0))]
    args += [params["w_dw"], params["b_dw"].reshape(1, Ch),
             params["w_proj"], params["b_proj"].reshape(1, Cout)]

    # One grid step per image; the expanded hidden activation lives in this scratch.
    # TODO(synk): for very large H*W (or N < num cores on v7x) tile H into row strips
    # with a 1-row halo instead of whole images, to cap VMEM and shard across cores.
    scratch = [pltpu.VMEM((H + 2, W + 2 * _PAD, Ch), jnp.float32)]

    y_flat = pl.pallas_call(
        kernel,
        out_shape=jax.ShapeDtypeStruct((N, Ho * Wo, Cout), x.dtype),
        grid=(N,),
        in_specs=in_specs,
        out_specs=pl.BlockSpec((1, Ho * Wo, Cout), lambda n: (n, 0, 0)),
        scratch_shapes=scratch,
        compiler_params=pltpu.CompilerParams(
            dimension_semantics=("parallel",),
            vmem_limit_bytes=32 * 1024 * 1024),
    )(*args)

    y = y_flat.reshape(N, Ho, Wo, Cout)
    return jnp.transpose(y, (0, 3, 1, 2))             # NHWC -> NCHW


# ---------------------------------------------------------------------------
# Parameter preparation (offline BN folding) + pure-JAX reference
# ---------------------------------------------------------------------------

def fold_bn(gamma, beta, mean, var, eps=1e-5):
    # BatchNorm2d in eval mode -> per-channel scale/bias.
    # TODO(synk): training-mode BatchNorm (batch statistics) is not implemented.
    scale = gamma / jnp.sqrt(var + eps)
    bias = beta - mean * scale
    return scale, bias


def prepare_params(raw):
    """Fold the eval-mode BN scale into the conv weights (one-time, offline)."""
    p = {}
    if "w_exp" in raw:
        s, b = fold_bn(*raw["bn_exp"])
        p["w_exp"] = raw["w_exp"] * s[None, :]
        p["b_exp"] = b
    s, b = fold_bn(*raw["bn_dw"])
    p["w_dw"] = raw["w_dw"] * s[None, None, :]
    p["b_dw"] = b
    s, b = fold_bn(*raw["bn_proj"])
    p["w_proj"] = raw["w_proj"] * s[None, :]
    p["b_proj"] = b
    return p


def ref_forward(x, raw, *, stride, expand_ratio, residual=True):
    """Unfused pure-JAX reference (conv -> BN -> ReLU chain, NCHW)."""
    dn = ("NCHW", "OIHW", "NCHW")
    prec = lax.Precision.HIGHEST
    Cin = x.shape[1]
    h = x
    if expand_ratio != 1:
        s, b = fold_bn(*raw["bn_exp"])
        w = jnp.transpose(raw["w_exp"], (1, 0))[:, :, None, None]
        h = lax.conv_general_dilated(h, w, (1, 1), [(0, 0), (0, 0)],
                                     dimension_numbers=dn, precision=prec)
        h = jnp.maximum(h * s[None, :, None, None] + b[None, :, None, None], 0.0)
    Ch = h.shape[1]
    s, b = fold_bn(*raw["bn_dw"])
    wd = jnp.transpose(raw["w_dw"], (2, 0, 1))[:, None, :, :]
    h = lax.conv_general_dilated(h, wd, (stride, stride), [(1, 1), (1, 1)],
                                 dimension_numbers=dn, feature_group_count=Ch,
                                 precision=prec)
    h = jnp.maximum(h * s[None, :, None, None] + b[None, :, None, None], 0.0)
    s, b = fold_bn(*raw["bn_proj"])
    wp = jnp.transpose(raw["w_proj"], (1, 0))[:, :, None, None]
    h = lax.conv_general_dilated(h, wp, (1, 1), [(0, 0), (0, 0)],
                                 dimension_numbers=dn, precision=prec)
    h = h * s[None, :, None, None] + b[None, :, None, None]
    Cout = h.shape[1]
    if stride == 1 and Cin == Cout and residual:
        h = x + h
    return h


# ---------------------------------------------------------------------------
# Demo / correctness check
# ---------------------------------------------------------------------------

def _bn_raw(key, c):
    k1, k2, k3, k4 = jax.random.split(key, 4)
    gamma = 1.0 + 0.1 * jax.random.normal(k1, (c,), jnp.float32)
    beta = 0.1 * jax.random.normal(k2, (c,), jnp.float32)
    mean = 0.1 * jax.random.normal(k3, (c,), jnp.float32)
    var = jnp.abs(jax.random.normal(k4, (c,), jnp.float32)) + 0.5
    return gamma, beta, mean, var


def make_raw_params(key, c_in, c_out, expand_ratio):
    c_hid = int(round(c_in * expand_ratio))
    keys = jax.random.split(key, 6)
    raw = {}
    if expand_ratio != 1:
        raw["w_exp"] = 0.2 * jax.random.normal(keys[0], (c_in, c_hid), jnp.float32)
        raw["bn_exp"] = _bn_raw(keys[1], c_hid)
    raw["w_dw"] = 0.2 * jax.random.normal(keys[2], (3, 3, c_hid), jnp.float32)
    raw["bn_dw"] = _bn_raw(keys[3], c_hid)
    raw["w_proj"] = 0.2 * jax.random.normal(keys[4], (c_hid, c_out), jnp.float32)
    raw["bn_proj"] = _bn_raw(keys[5], c_out)
    return raw


if __name__ == "__main__":
    key = jax.random.PRNGKey(0)
    N, Cin, H, W = 2, 8, 16, 16
    Cout = 8

    kx, kp1, kp2 = jax.random.split(key, 3)
    x = jax.random.normal(kx, (N, Cin, H, W), jnp.float32)

    raws = {2: make_raw_params(kp1, Cin, Cout, 2),
            1: make_raw_params(kp2, Cin, Cout, 1)}

    configs = [
        dict(stride=1, expand_ratio=2, residual=True),   # residual MBConv
        dict(stride=2, expand_ratio=2, residual=True),   # down-sampling MBConv
        dict(stride=1, expand_ratio=1, residual=True),   # no-expand MBConv
    ]

    for cfg in configs:
        raw = raws[cfg["expand_ratio"]]
        params = prepare_params(raw)
        y = inverted_residual(x, params, **cfg)
        y = jax.block_until_ready(y)
        y_ref = ref_forward(x, raw, **cfg)
        ho, wo = H // cfg["stride"], W // cfg["stride"]
        assert y.shape == (N, Cout, ho, wo), (cfg, y.shape)
        err = float(jnp.max(jnp.abs(y - y_ref)))
        assert jnp.allclose(y, y_ref, atol=1e-2, rtol=1e-2), (cfg, err)

    print("KERNEL_OK")
</pallas_src>

<mosaic_0001>
module attributes {stable_mosaic.version = 11 : i64} {
  func.func @_mbconv_kernel(%arg0: i32, %arg1: memref<1x256x8xf32, #tpu.memory_space<vmem>>, %arg2: memref<8x16xf32, #tpu.memory_space<vmem>>, %arg3: memref<1x16xf32, #tpu.memory_space<vmem>>, %arg4: memref<3x3x16xf32, #tpu.memory_space<vmem>>, %arg5: memref<1x16xf32, #tpu.memory_space<vmem>>, %arg6: memref<16x8xf32, #tpu.memory_space<vmem>>, %arg7: memref<1x8xf32, #tpu.memory_space<vmem>>, %arg8: memref<1x256x8xf32, #tpu.memory_space<vmem>>, %arg9: memref<18x32x16xf32, #tpu.memory_space<vmem>>) attributes {dimension_semantics = [#tpu.dimension_semantics<parallel>], iteration_bounds = array<i64: 2>, scalar_prefetch = 0 : i64, scratch_operands = 1 : i64, tpu.core_type = #tpu.core_type<tc>, window_params = [{transform_indices = @transform_0, window_bounds = array<i64: 1, 256, 8>}, {pipeline_mode = #tpu.pipeline_mode<synchronous>, transform_indices = @transform_1, window_bounds = array<i64: 8, 16>}, {pipeline_mode = #tpu.pipeline_mode<synchronous>, transform_indices = @transform_2, window_bounds = array<i64: 1, 16>}, {pipeline_mode = #tpu.pipeline_mode<synchronous>, transform_indices = @transform_3, window_bounds = array<i64: 3, 3, 16>}, {pipeline_mode = #tpu.pipeline_mode<synchronous>, transform_indices = @transform_4, window_bounds = array<i64: 1, 16>}, {pipeline_mode = #tpu.pipeline_mode<synchronous>, transform_indices = @transform_5, window_bounds = array<i64: 16, 8>}, {pipeline_mode = #tpu.pipeline_mode<synchronous>, transform_indices = @transform_6, window_bounds = array<i64: 1, 8>}, {transform_indices = @transform_7, window_bounds = array<i64: 1, 256, 8>}]} {
    %c0 = arith.constant 0 : index
    %c0_0 = arith.constant 0 : index
    %c0_1 = arith.constant 0 : index
    %0 = vector.load %arg1[%c0, %c0_0, %c0_1] : memref<1x256x8xf32, #tpu.memory_space<vmem>>, vector<1x256x8xf32>
    %1 = vector.shape_cast %0 : vector<1x256x8xf32> to vector<256x8xf32>
    %c0_2 = arith.constant 0 : index
    %c0_3 = arith.constant 0 : index
    %2 = vector.load %arg2[%c0_2, %c0_3] : memref<8x16xf32, #tpu.memory_space<vmem>>, vector<8x16xf32>
    %cst = arith.constant dense<0.000000e+00> : vector<256x16xf32>
    %3 = tpu.matmul %1, %2, %cst {dimension_numbers = #tpu.dot_dimension_numbers<[1], [0], [0], [1], [0, 0, 1, 1], [], []>} : vector<256x8xf32>, vector<8x16xf32>, vector<256x16xf32> -> vector<256x16xf32>
    %c0_4 = arith.constant 0 : index
    %c0_5 = arith.constant 0 : index
    %4 = vector.load %arg3[%c0_4, %c0_5] : memref<1x16xf32, #tpu.memory_space<vmem>>, vector<1x16xf32>
    %5 = vector.broadcast %4 : vector<1x16xf32> to vector<256x16xf32>
    %6 = arith.addf %3, %5 : vector<256x16xf32>
    %cst_6 = arith.constant 0.000000e+00 : f32
    %7 = vector.broadcast %cst_6 : f32 to vector<256x16xf32>
    %8 = arith.maximumf %6, %7 : vector<256x16xf32>
    %cst_7 = arith.constant 0.000000e+00 : f32
    %9 = vector.broadcast %cst_7 : f32 to vector<18x32x16xf32>
    %c0_8 = arith.constant 0 : index
    %c0_9 = arith.constant 0 : index
    %c0_10 = arith.constant 0 : index
    %10 = vector.load %arg9[%c0_8, %c0_9, %c0_10] : memref<18x32x16xf32, #tpu.memory_space<vmem>>, vector<18x32x16xf32>
    tpu.vector_store %arg9[%c0_8, %c0_9, %c0_10], %9 {strides = array<i32>} : memref<18x32x16xf32, #tpu.memory_space<vmem>>, vector<18x32x16xf32>,
    %11 = vector.shape_cast %8 : vector<256x16xf32> to vector<16x16x16xf32>
    %c1 = arith.constant 1 : index
    %c8 = arith.constant 8 : index
    %c0_11 = arith.constant 0 : index
    %12 = vector.load %arg9[%c1, %c8, %c0_11] : memref<18x32x16xf32, #tpu.memory_space<vmem>>, vector<16x16x16xf32>
    tpu.vector_store %arg9[%c1, %c8, %c0_11], %11 {strides = array<i32>} : memref<18x32x16xf32, #tpu.memory_space<vmem>>, vector<16x16x16xf32>,
    %c0_12 = arith.constant 0 : index
    %c0_13 = arith.constant 0 : index
    %c0_14 = arith.constant 0 : index
    %13 = vector.load %arg9[%c0_12, %c0_13, %c0_14] : memref<18x32x16xf32, #tpu.memory_space<vmem>>, vector<18x32x16xf32>
    %c0_15 = arith.constant 0 : index
    %c0_16 = arith.constant 0 : index
    %c0_17 = arith.constant 0 : index
    %14 = vector.load %arg4[%c0_15, %c0_16, %c0_17] : memref<3x3x16xf32, #tpu.memory_space<vmem>>, vector<3x3x16xf32>
    %cst_18 = arith.constant 0.000000e+00 : f32
    %15 = vector.broadcast %cst_18 : f32 to vector<16x16x16xf32>
    %16 = vector.extract_strided_slice %13 {offsets = [0, 7, 0], sizes = [16, 16, 16], strides = [1, 1, 1]} : vector<18x32x16xf32> to vector<16x16x16xf32>
    %17 = vector.extract_strided_slice %14 {offsets = [0, 0, 0], sizes = [1, 1, 16], strides = [1, 1, 1]} : vector<3x3x16xf32> to vector<1x1x16xf32>
    %18 = vector.shape_cast %17 : vector<1x1x16xf32> to vector<16xf32>
    %19 = vector.shape_cast %18 : vector<16xf32> to vector<1x1x16xf32>
    %20 = vector.broadcast %19 : vector<1x1x16xf32> to vector<16x16x16xf32>
    %21 = arith.mulf %16, %20 : vector<16x16x16xf32>
    %22 = arith.addf %15, %21 : vector<16x16x16xf32>
    %23 = vector.extract_strided_slice %13 {offsets = [0, 8, 0], sizes = [16, 16, 16], strides = [1, 1, 1]} : vector<18x32x16xf32> to vector<16x16x16xf32>
    %24 = vector.extract_strided_slice %14 {offsets = [0, 1, 0], sizes = [1, 1, 16], strides = [1, 1, 1]} : vector<3x3x16xf32> to vector<1x1x16xf32>
    %25 = vector.shape_cast %24 : vector<1x1x16xf32> to vector<16xf32>
    %26 = vector.shape_cast %25 : vector<16xf32> to vector<1x1x16xf32>
    %27 = vector.broadcast %26 : vector<1x1x16xf32> to vector<16x16x16xf32>
    %28 = arith.mulf %23, %27 : vector<16x16x16xf32>
    %29 = arith.addf %22, %28 : vector<16x16x16xf32>
    %30 = vector.extract_strided_slice %13 {offsets = [0, 9, 0], sizes = [16, 16, 16], strides = [1, 1, 1]} : vector<18x32x16xf32> to vector<16x16x16xf32>
    %31 = vector.extract_strided_slice %14 {offsets = [0, 2, 0], sizes = [1, 1, 16], strides = [1, 1, 1]} : vector<3x3x16xf32> to vector<1x1x16xf32>
    %32 = vector.shape_cast %31 : vector<1x1x16xf32> to vector<16xf32>
    %33 = vector.shape_cast %32 : vector<16xf32> to vector<1x1x16xf32>
    %34 = vector.broadcast %33 : vector<1x1x16xf32> to vector<16x16x16xf32>
    %35 = arith.mulf %30, %34 : vector<16x16x16xf32>
    %36 = arith.addf %29, %35 : vector<16x16x16xf32>
    %37 = vector.extract_strided_slice %13 {offsets = [1, 7, 0], sizes = [16, 16, 16], strides = [1, 1, 1]} : vector<18x32x16xf32> to vector<16x16x16xf32>
    %38 = vector.extract_strided_slice %14 {offsets = [1, 0, 0], sizes = [1, 1, 16], strides = [1, 1, 1]} : vector<3x3x16xf32> to vector<1x1x16xf32>
    %39 = vector.shape_cast %38 : vector<1x1x16xf32> to vector<16xf32>
    %40 = vector.shape_cast %39 : vector<16xf32> to vector<1x1x16xf32>
    %41 = vector.broadcast %40 : vector<1x1x16xf32> to vector<16x16x16xf32>
    %42 = arith.mulf %37, %41 : vector<16x16x16xf32>
    %43 = arith.addf %36, %42 : vector<16x16x16xf32>
    %44 = vector.extract_strided_slice %13 {offsets = [1, 8, 0], sizes = [16, 16, 16], strides = [1, 1, 1]} : vector<18x32x16xf32> to vector<16x16x16xf32>
    %45 = vector.extract_strided_slice %14 {offsets = [1, 1, 0], sizes = [1, 1, 16], strides = [1, 1, 1]} : vector<3x3x16xf32> to vector<1x1x16xf32>
    %46 = vector.shape_cast %45 : vector<1x1x16xf32> to vector<16xf32>
    %47 = vector.shape_cast %46 : vector<16xf32> to vector<1x1x16xf32>
    %48 = vector.broadcast %47 : vector<1x1x16xf32> to vector<16x16x16xf32>
    %49 = arith.mulf %44, %48 : vector<16x16x16xf32>
    %50 = arith.addf %43, %49 : vector<16x16x16xf32>
    %51 = vector.extract_strided_slice %13 {offsets = [1, 9, 0], sizes = [16, 16, 16], strides = [1, 1, 1]} : vector<18x32x16xf32> to vector<16x16x16xf32>
    %52 = vector.extract_strided_slice %14 {offsets = [1, 2, 0], sizes = [1, 1, 16], strides = [1, 1, 1]} : vector<3x3x16xf32> to vector<1x1x16xf32>
    %53 = vector.shape_cast %52 : vector<1x1x16xf32> to vector<16xf32>
    %54 = vector.shape_cast %53 : vector<16xf32> to vector<1x1x16xf32>
    %55 = vector.broadcast %54 : vector<1x1x16xf32> to vector<16x16x16xf32>
    %56 = arith.mulf %51, %55 : vector<16x16x16xf32>
    %57 = arith.addf %50, %56 : vector<16x16x16xf32>
    %58 = vector.extract_strided_slice %13 {offsets = [2, 7, 0], sizes = [16, 16, 16], strides = [1, 1, 1]} : vector<18x32x16xf32> to vector<16x16x16xf32>
    %59 = vector.extract_strided_slice %14 {offsets = [2, 0, 0], sizes = [1, 1, 16], strides = [1, 1, 1]} : vector<3x3x16xf32> to vector<1x1x16xf32>
    %60 = vector.shape_cast %59 : vector<1x1x16xf32> to vector<16xf32>
    %61 = vector.shape_cast %60 : vector<16xf32> to vector<1x1x16xf32>
    %62 = vector.broadcast %61 : vector<1x1x16xf32> to vector<16x16x16xf32>
    %63 = arith.mulf %58, %62 : vector<16x16x16xf32>
    %64 = arith.addf %57, %63 : vector<16x16x16xf32>
    %65 = vector.extract_strided_slice %13 {offsets = [2, 8, 0], sizes = [16, 16, 16], strides = [1, 1, 1]} : vector<18x32x16xf32> to vector<16x16x16xf32>
    %66 = vector.extract_strided_slice %14 {offsets = [2, 1, 0], sizes = [1, 1, 16], strides = [1, 1, 1]} : vector<3x3x16xf32> to vector<1x1x16xf32>
    %67 = vector.shape_cast %66 : vector<1x1x16xf32> to vector<16xf32>
    %68 = vector.shape_cast %67 : vector<16xf32> to vector<1x1x16xf32>
    %69 = vector.broadcast %68 : vector<1x1x16xf32> to vector<16x16x16xf32>
    %70 = arith.mulf %65, %69 : vector<16x16x16xf32>
    %71 = arith.addf %64, %70 : vector<16x16x16xf32>
    %72 = vector.extract_strided_slice %13 {offsets = [2, 9, 0], sizes = [16, 16, 16], strides = [1, 1, 1]} : vector<18x32x16xf32> to vector<16x16x16xf32>
    %73 = vector.extract_strided_slice %14 {offsets = [2, 2, 0], sizes = [1, 1, 16], strides = [1, 1, 1]} : vector<3x3x16xf32> to vector<1x1x16xf32>
    %74 = vector.shape_cast %73 : vector<1x1x16xf32> to vector<16xf32>
    %75 = vector.shape_cast %74 : vector<16xf32> to vector<1x1x16xf32>
    %76 = vector.broadcast %75 : vector<1x1x16xf32> to vector<16x16x16xf32>
    %77 = arith.mulf %72, %76 : vector<16x16x16xf32>
    %78 = arith.addf %71, %77 : vector<16x16x16xf32>
    %79 = vector.shape_cast %78 : vector<16x16x16xf32> to vector<256x16xf32>
    %c0_19 = arith.constant 0 : index
    %c0_20 = arith.constant 0 : index
    %80 = vector.load %arg5[%c0_19, %c0_20] : memref<1x16xf32, #tpu.memory_space<vmem>>, vector<1x16xf32>
    %81 = vector.broadcast %80 : vector<1x16xf32> to vector<256x16xf32>
    %82 = arith.addf %79, %81 : vector<256x16xf32>
    %cst_21 = arith.constant 0.000000e+00 : f32
    %83 = vector.broadcast %cst_21 : f32 to vector<256x16xf32>
    %84 = arith.maximumf %82, %83 : vector<256x16xf32>
    %c0_22 = arith.constant 0 : index
    %c0_23 = arith.constant 0 : index
    %85 = vector.load %arg6[%c0_22, %c0_23] : memref<16x8xf32, #tpu.memory_space<vmem>>, vector<16x8xf32>
    %c0_24 = arith.constant 0 : index
    %c0_25 = arith.constant 0 : index
    %86 = vector.load %arg7[%c0_24, %c0_25] : memref<1x8xf32, #tpu.memory_space<vmem>>, vector<1x8xf32>
    %cst_26 = arith.constant dense<0.000000e+00> : vector<256x8xf32>
    %87 = tpu.matmul %84, %85, %cst_26 {dimension_numbers = #tpu.dot_dimension_numbers<[1], [0], [0], [1], [0, 0, 1, 1], [], []>} : vector<256x16xf32>, vector<16x8xf32>, vector<256x8xf32> -> vector<256x8xf32>
    %88 = vector.broadcast %86 : vector<1x8xf32> to vector<256x8xf32>
    %89 = arith.addf %87, %88 : vector<256x8xf32>
    %90 = arith.addf %89, %1 : vector<256x8xf32>
    %c0_27 = arith.constant 0 : index
    %c0_28 = arith.constant 0 : index
    %c0_29 = arith.constant 0 : index
    %91 = vector.load %arg8[%c0_27, %c0_28, %c0_29] : memref<1x256x8xf32, #tpu.memory_space<vmem>>, vector<1x256x8xf32>
    %92 = vector.shape_cast %91 : vector<1x256x8xf32> to vector<256x8xf32>
    %93 = vector.shape_cast %90 : vector<256x8xf32> to vector<1x256x8xf32>
    tpu.vector_store %arg8[%c0_27, %c0_28, %c0_29], %93 {strides = array<i32>} : memref<1x256x8xf32, #tpu.memory_space<vmem>>, vector<1x256x8xf32>,
    return
  }
  func.func @transform_0(%arg0: i32) -> (i32, i32, i32) {
    %c0_i32 = arith.constant 0 : i32
    %c0_i32_0 = arith.constant 0 : i32
    %c0_i32_1 = arith.constant 0 : i32
    return %arg0, %c0_i32, %c0_i32_0 : i32, i32, i32
  }
  func.func @transform_1(%arg0: i32) -> (i32, i32) {
    %c0_i32 = arith.constant 0 : i32
    %c0_i32_0 = arith.constant 0 : i32
    %c0_i32_1 = arith.constant 0 : i32
    return %c0_i32, %c0_i32_0 : i32, i32
  }
  func.func @transform_2(%arg0: i32) -> (i32, i32) {
    %c0_i32 = arith.constant 0 : i32
    %c0_i32_0 = arith.constant 0 : i32
    %c0_i32_1 = arith.constant 0 : i32
    return %c0_i32, %c0_i32_0 : i32, i32
  }
  func.func @transform_3(%arg0: i32) -> (i32, i32, i32) {
    %c0_i32 = arith.constant 0 : i32
    %c0_i32_0 = arith.constant 0 : i32
    %c0_i32_1 = arith.constant 0 : i32
    %c0_i32_2 = arith.constant 0 : i32
    return %c0_i32, %c0_i32_0, %c0_i32_1 : i32, i32, i32
  }
  func.func @transform_4(%arg0: i32) -> (i32, i32) {
    %c0_i32 = arith.constant 0 : i32
    %c0_i32_0 = arith.constant 0 : i32
    %c0_i32_1 = arith.constant 0 : i32
    return %c0_i32, %c0_i32_0 : i32, i32
  }
  func.func @transform_5(%arg0: i32) -> (i32, i32) {
    %c0_i32 = arith.constant 0 : i32
    %c0_i32_0 = arith.constant 0 : i32
    %c0_i32_1 = arith.constant 0 : i32
    return %c0_i32, %c0_i32_0 : i32, i32
  }
  func.func @transform_6(%arg0: i32) -> (i32, i32) {
    %c0_i32 = arith.constant 0 : i32
    %c0_i32_0 = arith.constant 0 : i32
    %c0_i32_1 = arith.constant 0 : i32
    return %c0_i32, %c0_i32_0 : i32, i32
  }
  func.func @transform_7(%arg0: i32) -> (i32, i32, i32) {
    %c0_i32 = arith.constant 0 : i32
    %c0_i32_0 = arith.constant 0 : i32
    %c0_i32_1 = arith.constant 0 : i32
    return %arg0, %c0_i32, %c0_i32_0 : i32, i32, i32
  }
}

</mosaic_0001>

<llo_original>
// kernel: tpu_custom_call.1
$region0: #{tpu_custom_call.1}
  #allocation0 [shape = 'u32[]', space=smem, size = 0x4, offset = 0x4, fixed_abs, tag = 'smem constant byte address 0x4 - core index']
  #allocation1 [shape = 'u32[144,128]{1,0:T(1,128)}', space=vmem, size = 0x12000, scoped, tag = 'internal scratch']
  #allocation2 [shape = 'f32[18,32,16]{2,1,0:T(8,128)}', space=vmem, size = 0x48000, scoped, tag = 'scratch operand']
  %s0 = inlined_call_operand.vmem [shape: f32[2,256,8], index: 0, kind: input, shape index: {}]
  %s1 = inlined_call_operand.vmem [shape: f32[8,16], index: 1, kind: input, shape index: {}]
  %s2 = inlined_call_operand.vmem [shape: f32[1,16], index: 2, kind: input, shape index: {}]
  %s3 = inlined_call_operand.vmem [shape: f32[3,3,16], index: 3, kind: input, shape index: {}]
  %s4 = inlined_call_operand.vmem [shape: f32[1,16], index: 4, kind: input, shape index: {}]
  %s5 = inlined_call_operand.vmem [shape: f32[16,8], index: 5, kind: input, shape index: {}]
  %s6 = inlined_call_operand.vmem [shape: f32[1,8], index: 6, kind: input, shape index: {}]
  %s7 = inlined_call_operand.vmem [shape: f32[2,256,8], index: 7, kind: output, shape index: {}]
  %s8 = sld [smem:[#allocation0]]
  $region61: #{tpu_custom_call.1} parent=0
    _
  %s10 = ssub.s32 1, %s8
  %s11 = scalar_select 0, %s10, %s8
  loop: start=0, step=1, limit=4
  $region2: #{tpu_custom_call.1} parent=0 // loop_pre_header
    _
  $region3: #{tpu_custom_call.1} parent=0 // loop_header
    %s13 = sphi 0, %s17
    %p14 = scmp.ge.s32.totalorder %s13, 4
    %s23 = sphi 0, %s25
    %s26 = sphi 0, %s23
    %s27 = sphi 0, %s26
    %s43 = sphi 0, %s27
    %s47 = sphi 0, %s47
    %s49 = sphi 0, %s47
    %s50 = sphi 0, %s49
    %s64 = sphi 0, %s50
    %s68 = sphi 0, %s68
    %s70 = sphi 0, %s68
    %s71 = sphi 0, %s70
    %s85 = sphi 0, %s71
    %s89 = sphi 0, %s89
    %s91 = sphi 0, %s89
    %s92 = sphi 0, %s91
    %s106 = sphi 0, %s92
    %s110 = sphi 0, %s110
    %s112 = sphi 0, %s110
    %s113 = sphi 0, %s112
    %s127 = sphi 0, %s113
    %s131 = sphi 0, %s131
    %s133 = sphi 0, %s131
    %s134 = sphi 0, %s133
    %s148 = sphi 0, %s134
    %s152 = sphi 0, %s152
    %s154 = sphi 0, %s152
    %s155 = sphi 0, %s154
    %s169 = sphi 0, %s155
    %s175 = sphi 0, %s177
    %s178 = sphi 0, %s175
    %s179 = sphi 0, %s178
    %s195 = sphi 0, %s179
  $region4: #{tpu_custom_call.1} parent=0 // loop_header_branch
    %16 = sbr.rel (%p14) target = $region8
  $region5: #{tpu_custom_call.1} parent=0 // loop_body
    %s18 = ssub.s32 %s13, 1
    %s19 = ssub.s32 %s13, 2
    %s20 = sadd.s32 %s13, 1
    %s21 = ssub.s32 %s13, %s20
    %p22 = scmp.eq.s32.totalorder %s21, 0
    %s24 = sadd.s32 %s23, 1
    %s25 = scalar_select %p22, %s23, %s24
    %p28 = pneg %p22
    %p29 = scmp.eq.s32.totalorder %s13, 1
    %p30 = por %p28, %p29
    %p31 = scmp.ne.s32.totalorder %s23, %s26
    %p32 = scmp.eq.s32.totalorder %s13, 0
    %p33 = por %p31, %p32
    %p34 = scmp.ne.s32.totalorder %s23, %s26
    %p35 = scmp.eq.s32.totalorder %s18, 1
    %p36 = por %p34, %p35
    %p37 = scmp.ne.s32.totalorder %s26, %s27
    %p38 = scmp.eq.s32.totalorder %s18, 0
    %p39 = por %p37, %p38
    %p40 = scmp.ne.s32.totalorder %s26, %s27
    %p41 = scmp.eq.s32.totalorder %s19, 1
    %p42 = por %p40, %p41
    %p44 = scmp.ne.s32.totalorder %s27, %s43
    %p45 = scmp.eq.s32.totalorder %s19, 0
    %p46 = por %p44, %p45
    %s48 = sadd.s32 %s47, 1
    %p51 = scmp.eq.s32.totalorder %s13, 1
    %p52 = scmp.ne.s32.totalorder %s47, %s49
    %p53 = scmp.eq.s32.totalorder %s13, 0
    %p54 = por %p52, %p53
    %p55 = scmp.ne.s32.totalorder %s47, %s49
    %p56 = scmp.eq.s32.totalorder %s18, 1
    %p57 = por %p55, %p56
    %p58 = scmp.ne.s32.totalorder %s49, %s50
    %p59 = scmp.eq.s32.totalorder %s18, 0
    %p60 = por %p58, %p59
    %p61 = scmp.ne.s32.totalorder %s49, %s50
    %p62 = scmp.eq.s32.totalorder %s19, 1
    %p63 = por %p61, %p62
    %p65 = scmp.ne.s32.totalorder %s50, %s64
    %p66 = scmp.eq.s32.totalorder %s19, 0
    %p67 = por %p65, %p66
    %s69 = sadd.s32 %s68, 1
    %p72 = scmp.eq.s32.totalorder %s13, 1
    %p73 = scmp.ne.s32.totalorder %s68, %s70
    %p74 = scmp.eq.s32.totalorder %s13, 0
    %p75 = por %p73, %p74
    %p76 = scmp.ne.s32.totalorder %s68, %s70
    %p77 = scmp.eq.s32.totalorder %s18, 1
    %p78 = por %p76, %p77
    %p79 = scmp.ne.s32.totalorder %s70, %s71
    %p80 = scmp.eq.s32.totalorder %s18, 0
    %p81 = por %p79, %p80
    %p82 = scmp.ne.s32.totalorder %s70, %s71
    %p83 = scmp.eq.s32.totalorder %s19, 1
    %p84 = por %p82, %p83
    %p86 = scmp.ne.s32.totalorder %s71, %s85
    %p87 = scmp.eq.s32.totalorder %s19, 0
    %p88 = por %p86, %p87
    %s90 = sadd.s32 %s89, 1
    %p93 = scmp.eq.s32.totalorder %s13, 1
    %p94 = scmp.ne.s32.totalorder %s89, %s91
    %p95 = scmp.eq.s32.totalorder %s13, 0
    %p96 = por %p94, %p95
    %p97 = scmp.ne.s32.totalorder %s89, %s91
    %p98 = scmp.eq.s32.totalorder %s18, 1
    %p99 = por %p97, %p98
    %p100 = scmp.ne.s32.totalorder %s91, %s92
    %p101 = scmp.eq.s32.totalorder %s18, 0
    %p102 = por %p100, %p101
    %p103 = scmp.ne.s32.totalorder %s91, %s92
    %p104 = scmp.eq.s32.totalorder %s19, 1
    %p105 = por %p103, %p104
    %p107 = scmp.ne.s32.totalorder %s92, %s106
    %p108 = scmp.eq.s32.totalorder %s19, 0
    %p109 = por %p107, %p108
    %s111 = sadd.s32 %s110, 1
    %p114 = scmp.eq.s32.totalorder %s13, 1
    %p115 = scmp.ne.s32.totalorder %s110, %s112
    %p116 = scmp.eq.s32.totalorder %s13, 0
    %p117 = por %p115, %p116
    %p118 = scmp.ne.s32.totalorder %s110, %s112
    %p119 = scmp.eq.s32.totalorder %s18, 1
    %p120 = por %p118, %p119
    %p121 = scmp.ne.s32.totalorder %s112, %s113
    %p122 = scmp.eq.s32.totalorder %s18, 0
    %p123 = por %p121, %p122
    %p124 = scmp.ne.s32.totalorder %s112, %s113
    %p125 = scmp.eq.s32.totalorder %s19, 1
    %p126 = por %p124, %p125
    %p128 = scmp.ne.s32.totalorder %s113, %s127
    %p129 = scmp.eq.s32.totalorder %s19, 0
    %p130 = por %p128, %p129
    %s132 = sadd.s32 %s131, 1
    %p135 = scmp.eq.s32.totalorder %s13, 1
    %p136 = scmp.ne.s32.totalorder %s131, %s133
    %p137 = scmp.eq.s32.totalorder %s13, 0
    %p138 = por %p136, %p137
    %p139 = scmp.ne.s32.totalorder %s131, %s133
    %p140 = scmp.eq.s32.totalorder %s18, 1
    %p141 = por %p139, %p140
    %p142 = scmp.ne.s32.totalorder %s133, %s134
    %p143 = scmp.eq.s32.totalorder %s18, 0
    %p144 = por %p142, %p143
    %p145 = scmp.ne.s32.totalorder %s133, %s134
    %p146 = scmp.eq.s32.totalorder %s19, 1
    %p147 = por %p145, %p146
    %p149 = scmp.ne.s32.totalorder %s134, %s148
    %p150 = scmp.eq.s32.totalorder %s19, 0
    %p151 = por %p149, %p150
    %s153 = sadd.s32 %s152, 1
    %p156 = scmp.eq.s32.totalorder %s13, 1
    %p157 = scmp.ne.s32.totalorder %s152, %s154
    %p158 = scmp.eq.s32.totalorder %s13, 0
    %p159 = por %p157, %p158
    %p160 = scmp.ne.s32.totalorder %s152, %s154
    %p161 = scmp.eq.s32.totalorder %s18, 1
    %p162 = por %p160, %p161
    %p163 = scmp.ne.s32.totalorder %s154, %s155
    %p164 = scmp.eq.s32.totalorder %s18, 0
    %p165 = por %p163, %p164
    %p166 = scmp.ne.s32.totalorder %s154, %s155
    %p167 = scmp.eq.s32.totalorder %s19, 1
    %p168 = por %p166, %p167
    %p170 = scmp.ne.s32.totalorder %s155, %s169
    %p171 = scmp.eq.s32.totalorder %s19, 0
    %p172 = por %p170, %p171
    %s173 = ssub.s32 %s13, %s20
    %p174 = scmp.eq.s32.totalorder %s173, 0
    %s176 = sadd.s32 %s175, 1
    %s177 = scalar_select %p174, %s175, %s176
    %p180 = pneg %p174
    %p181 = scmp.eq.s32.totalorder %s13, 1
    %p182 = por %p180, %p181
    %p183 = scmp.ne.s32.totalorder %s175, %s178
    %p184 = scmp.eq.s32.totalorder %s13, 0
    %p185 = por %p183, %p184
    %p186 = scmp.ne.s32.totalorder %s175, %s178
    %p187 = scmp.eq.s32.totalorder %s18, 1
    %p188 = por %p186, %p187
    %p189 = scmp.ne.s32.totalorder %s178, %s179
    %p190 = scmp.eq.s32.totalorder %s18, 0
    %p191 = por %p189, %p190
    %p192 = scmp.ne.s32.totalorder %s178, %s179
    %p193 = scmp.eq.s32.totalorder %s19, 1
    %p194 = por %p192, %p193
    %p196 = scmp.ne.s32.totalorder %s179, %s195
    %p197 = scmp.eq.s32.totalorder %s19, 0
    %p198 = por %p196, %p197
    %p199 = scmp.le.s32.totalorder 1, %s13
    %p200 = scmp.lt.s32.totalorder %s13, 3
    %p201 = pnand %p199, %p200
    %p202 = pneg %p201
    // Predicated region
    $region9: #{tpu_custom_call.1} parent=5 // pred_check
      _
    $region10: #{tpu_custom_call.1} parent=5 // pred_check_branch
      %204 = sbr.rel (%p201) target = $region12
    $region11: #{tpu_custom_call.1} parent=5 // pred_region
      %s205 = ssub.s32 %s13, 1
      // Predicated region
      $region13: #{tpu_custom_call.1} parent=11 // pred_check
        %p206 = pneg %p60
      $region14: #{tpu_custom_call.1} parent=11 // pred_check_branch
        %208 = sbr.rel (%p206) target = $region16
      $region15: #{tpu_custom_call.1} parent=11 // pred_region
        _
      $region16: #{tpu_custom_call.1} parent=11 // pred_fallthru
        _
      // Predicated region
      $region17: #{tpu_custom_call.1} parent=11 // pred_check
        %p209 = pneg %p81
      $region18: #{tpu_custom_call.1} parent=11 // pred_check_branch
        %211 = sbr.rel (%p209) target = $region20
      $region19: #{tpu_custom_call.1} parent=11 // pred_region
        _
      $region20: #{tpu_custom_call.1} parent=11 // pred_fallthru
        _
      // Predicated region
      $region21: #{tpu_custom_call.1} parent=11 // pred_check
        %p212 = pneg %p102
      $region22: #{tpu_custom_call.1} parent=11 // pred_check_branch
        %214 = sbr.rel (%p212) target = $region24
      $region23: #{tpu_custom_call.1} parent=11 // pred_region
        _
      $region24: #{tpu_custom_call.1} parent=11 // pred_fallthru
        _
      // Predicated region
      $region25: #{tpu_custom_call.1} parent=11 // pred_check
        %p215 = pneg %p123
      $region26: #{tpu_custom_call.1} parent=11 // pred_check_branch
        %217 = sbr.rel (%p215) target = $region28
      $region27: #{tpu_custom_call.1} parent=11 // pred_region
        _
      $region28: #{tpu_custom_call.1} parent=11 // pred_fallthru
        _
      // Predicated region
      $region29: #{tpu_custom_call.1} parent=11 // pred_check
        %p218 = pneg %p144
      $region30: #{tpu_custom_call.1} parent=11 // pred_check_branch
        %220 = sbr.rel (%p218) target = $region32
      $region31: #{tpu_custom_call.1} parent=11 // pred_region
        _
      $region32: #{tpu_custom_call.1} parent=11 // pred_fallthru
        _
      // Predicated region
      $region33: #{tpu_custom_call.1} parent=11 // pred_check
        %p221 = pneg %p165
      $region34: #{tpu_custom_call.1} parent=11 // pred_check_branch
        %223 = sbr.rel (%p221) target = $region36
      $region35: #{tpu_custom_call.1} parent=11 // pred_region
        _
      $region36: #{tpu_custom_call.1} parent=11 // pred_fallthru
        _
    $region12: #{tpu_custom_call.1} parent=5 // pred_fallthru
      _
    %p224 = scmp.lt.s32.totalorder %s13, 2
    // Predicated region
    $region37: #{tpu_custom_call.1} parent=5 // pred_check
      %p225 = pneg %p224
    $region38: #{tpu_custom_call.1} parent=5 // pred_check_branch
      %227 = sbr.rel (%p225) target = $region40
    $region39: #{tpu_custom_call.1} parent=5 // pred_region
      // Predicated region
      $region41: #{tpu_custom_call.1} parent=39 // pred_check
        %p228 = pneg %p33
      $region42: #{tpu_custom_call.1} parent=39 // pred_check_branch
        %230 = sbr.rel (%p228) target = $region44
      $region43: #{tpu_custom_call.1} parent=39 // pred_region
        %p231 = scmp.lt.s32.totalorder %s13, 1
        %s232 = scalar_select %p231, %s13, 1
        %s233 = smul.addr %s232, 32
        %s234 = smul.addr %s233, 8
        %s235 = scalar_lea.vmem %s0, %s234
      $region44: #{tpu_custom_call.1} parent=39 // pred_fallthru
        _
    $region40: #{tpu_custom_call.1} parent=5 // pred_fallthru
      _
    %p236 = scmp.le.s32.totalorder 1, %s13
    %p237 = scmp.lt.s32.totalorder %s13, 3
    %p238 = pnand %p236, %p237
    %p239 = pneg %p238
    // Predicated region
    $region45: #{tpu_custom_call.1} parent=5 // pred_check
      _
    $region46: #{tpu_custom_call.1} parent=5 // pred_check_branch
      %241 = sbr.rel (%p238) target = $region48
    $region47: #{tpu_custom_call.1} parent=5 // pred_region
      %s242 = ssub.s32 %s13, 1
      %p243 = scmp.lt.s32.totalorder %s18, 1
      %s244 = scalar_select %p243, %s18, 1
      %s245 = smul.addr %s244, 32
      %s246 = smul.addr %s245, 8
      %s247 = scalar_lea.vmem %s0, %s246
      %p248 = pneg %p39
      %p249 = pneg %p36
      %p250 = pneg %p60
      %p251 = pneg %p57
      %p252 = pneg %p81
      %p253 = pneg %p78
      %p254 = pneg %p102
      %p255 = pneg %p99
      %p256 = pneg %p123
      %p257 = pneg %p120
      %p258 = pneg %p144
      %p259 = pneg %p141
      %p260 = pneg %p165
      %p261 = pneg %p162
      %p262 = pneg %p191
      %p263 = pneg %p188
      %p264 = scmp.lt.s32.totalorder %s18, 1
      %s265 = scalar_select %p264, %s18, 1
      %s266 = smul.addr %s265, 32
      %s267 = smul.addr %s266, 8
      %s268 = scalar_lea.vmem %s7, %s267
      %p269 = scmp.lt.s32.totalorder %s18, 1
      %s270 = scalar_select %p269, %s18, 1
      %s271 = smul.addr %s270, 32
      %s272 = smul.addr %s271, 8
      %s273 = scalar_lea.vmem %s0, %s272
      %p274 = scmp.lt.s32.totalorder %s18, 1
      %s275 = scalar_select %p274, %s18, 1
      %s276 = smul.addr %s275, 32
      %s277 = smul.addr %s276, 8
      %s278 = scalar_lea.vmem %s7, %s277
      %v279 = vld [vmem:[%s273] sm:$0xff]
      %v280 = vld [vmem:[%s273 + $0x8] sm:$0xff]
      %v281 = vld [vmem:[%s273 + $0x10] sm:$0xff]
      %v282 = vld [vmem:[%s273 + $0x18] sm:$0xff]
      %v283 = vld [vmem:[%s273 + $0x20] sm:$0xff]
      %v284 = vld [vmem:[%s273 + $0x28] sm:$0xff]
      %v285 = vld [vmem:[%s273 + $0x30] sm:$0xff]
      %v286 = vld [vmem:[%s273 + $0x38] sm:$0xff]
      %v287 = vld [vmem:[%s273 + $0x40] sm:$0xff]
      %v288 = vld [vmem:[%s273 + $0x48] sm:$0xff]
      %v289 = vld [vmem:[%s273 + $0x50] sm:$0xff]
      %v290 = vld [vmem:[%s273 + $0x58] sm:$0xff]
      %v291 = vld [vmem:[%s273 + $0x60] sm:$0xff]
      %v292 = vld [vmem:[%s273 + $0x68] sm:$0xff]
      %v293 = vld [vmem:[%s273 + $0x70] sm:$0xff]
      %v294 = vld [vmem:[%s273 + $0x78] sm:$0xff]
      %v295 = vld [vmem:[%s273 + $0x80] sm:$0xff]
      %v296 = vld [vmem:[%s273 + $0x88] sm:$0xff]
      %v297 = vld [vmem:[%s273 + $0x90] sm:$0xff]
      %v298 = vld [vmem:[%s273 + $0x98] sm:$0xff]
      %v299 = vld [vmem:[%s273 + $0xa0] sm:$0xff]
      %v300 = vld [vmem:[%s273 + $0xa8] sm:$0xff]
      %v301 = vld [vmem:[%s273 + $0xb0] sm:$0xff]
      %v302 = vld [vmem:[%s273 + $0xb8] sm:$0xff]
      %v303 = vld [vmem:[%s273 + $0xc0] sm:$0xff]
      %v304 = vld [vmem:[%s273 + $0xc8] sm:$0xff]
      %v305 = vld [vmem:[%s273 + $0xd0] sm:$0xff]
      %v306 = vld [vmem:[%s273 + $0xd8] sm:$0xff]
      %v307 = vld [vmem:[%s273 + $0xe0] sm:$0xff]
      %v308 = vld [vmem:[%s273 + $0xe8] sm:$0xff]
      %v309 = vld [vmem:[%s273 + $0xf0] sm:$0xff]
      %v310 = vld [vmem:[%s273 + $0xf8] sm:$0xff]
      %v311 = vld [vmem:[%s1] sm:$0xff]
      %v312 = vld [vmem:[%s2] sm:$0x1]
      %v314 = vlaneseq
      %v315 = vshrl.u32 %v314, 7
      %v316 = vsub.s32 0, %v315
      %v317 = vrot.slane %v312, %v316
      %vm319 = vcmask 64512
      %v321 = vsel %vm319, %v279, 0
      %v324 = vsel %vm319, %v280, 0
      %v327 = vsel %vm319, %v281, 0
      %v330 = vsel %vm319, %v282, 0
      %v333 = vsel %vm319, %v283, 0
      %v336 = vsel %vm319, %v284, 0
      %v339 = vsel %vm319, %v285, 0
      %v342 = vsel %vm319, %v286, 0
      %v345 = vsel %vm319, %v287, 0
      %v348 = vsel %vm319, %v288, 0
      %v351 = vsel %vm319, %v289, 0
      %v354 = vsel %vm319, %v290, 0
      %v357 = vsel %vm319, %v291, 0
      %v360 = vsel %vm319, %v292, 0
      %v363 = vsel %vm319, %v293, 0
      %v366 = vsel %vm319, %v294, 0
      %v369 = vsel %vm319, %v295, 0
      %v372 = vsel %vm319, %v296, 0
      %v375 = vsel %vm319, %v297, 0
      %v378 = vsel %vm319, %v298, 0
      %v381 = vsel %vm319, %v299, 0
      %v384 = vsel %vm319, %v300, 0
      %v387 = vsel %vm319, %v301, 0
      %v390 = vsel %vm319, %v302, 0
      %v393 = vsel %vm319, %v303, 0
      %v396 = vsel %vm319, %v304, 0
      %v399 = vsel %vm319, %v305, 0
      %v402 = vsel %vm319, %v306, 0
      %v405 = vsel %vm319, %v307, 0
      %v408 = vsel %vm319, %v308, 0
      %v411 = vsel %vm319, %v309, 0
      %v414 = vsel %vm319, %v310, 0
      %416 = vmatprep.subr.mxu0 0.0
      %417 = vmatpush1.msra.mxu0 %v311
      %418 = vmatprep.subr.mxu0 0.0
      %419 = vmatpush1.msra.mxu0 0.0
      %420 = vmatprep.subr.mxu0 0.0
      %421 = vmatpush1.msra.mxu0 0.0
      %422 = vmatprep.subr.mxu0 0.0
      %423 = vmatpush1.msra.mxu0 0.0
      %424 = vmatprep.subr.mxu0 0.0
      %425 = vmatpush1.msra.mxu0 0.0
      %426 = vmatprep.subr.mxu0 0.0
      %427 = vmatpush1.msra.mxu0 0.0
      %428 = vmatprep.subr.mxu0 0.0
      %429 = vmatpush1.msra.mxu0 0.0
      %430 = vmatprep.subr.mxu0 0.0
      %431 = vmatpush1.msra.mxu0 0.0
      %432 = vmatprep.subr.mxu0 0.0
      %433 = vmatpush1.msra.mxu0 0.0
      %434 = vmatprep.subr.mxu0 0.0
      %435 = vmatpush1.msra.mxu0 0.0
      %436 = vmatprep.subr.mxu0 0.0
      %437 = vmatpush1.msra.mxu0 0.0
      %438 = vmatprep.subr.mxu0 0.0
      %439 = vmatpush1.msra.mxu0 0.0
      %440 = vmatprep.subr.mxu0 0.0
      %441 = vmatpush1.msra.mxu0 0.0
      %442 = vmatprep.subr.mxu0 0.0
      %443 = vmatpush1.msra.mxu0 0.0
      %444 = vmatprep.subr.mxu0 0.0
      %445 = vmatpush1.msra.mxu0 0.0
      %446 = vmatprep.subr.mxu0 0.0
      %447 = vmatpush1.msra.mxu0 0.0
      %448 = vmatprep.subr.mxu0 0.0
      %449 = vmatpush1.msra.mxu0 0.0
      %450 = vmatprep.subr.mxu0 0.0
      %451 = vmatpush1.msra.mxu0 0.0
      %452 = vmatprep.subr.mxu0 0.0
      %453 = vmatpush1.msra.mxu0 0.0
      %454 = vmatprep.subr.mxu0 0.0
      %455 = vmatpush1.msra.mxu0 0.0
      %456 = vmatprep.subr.mxu0 0.0
      %457 = vmatpush1.msra.mxu0 0.0
      %458 = vmatprep.subr.mxu0 0.0
      %459 = vmatpush1.msra.mxu0 0.0
      %460 = vmatprep.subr.mxu0 0.0
      %461 = vmatpush1.msra.mxu0 0.0
      %462 = vmatprep.subr.mxu0 0.0
      %463 = vmatpush1.msra.mxu0 0.0
      %464 = vmatprep.subr.mxu0 0.0
      %465 = vmatpush1.msra.mxu0 0.0
      %466 = vmatprep.subr.mxu0 0.0
      %467 = vmatpush1.msra.mxu0 0.0
      %468 = vmatprep.subr.mxu0 0.0
      %469 = vmatpush1.msra.mxu0 0.0
      %470 = vmatprep.subr.mxu0 0.0
      %471 = vmatpush1.msra.mxu0 0.0
      %472 = vmatprep.subr.mxu0 0.0
      %473 = vmatpush1.msra.mxu0 0.0
      %474 = vmatprep.subr.mxu0 0.0
      %475 = vmatpush1.msra.mxu0 0.0
      %476 = vmatprep.subr.mxu0 0.0
      %477 = vmatpush1.msra.mxu0 0.0
      %478 = vmatprep.subr.mxu0 0.0
      %479 = vmatpush1.msra.mxu0 0.0
      %480 = vmatprep.mubr.f32.mxu0 0.0
      %481 = vmatmul.mubr.f32.gmra.mrb[0].mxu0 %v321
      %v482 = vpop.f32.mrb[0].mxu0
      %v483 = vadd.f32 %v317, %v482
      %v484 = vpop.f32.mrb[0].mxu0
      %485 = vmatprep.mubr.f32.mxu0 0.0
      %486 = vmatmul.mubr.f32.gmra.mrb[0].mxu0 %v324
      %v487 = vpop.f32.mrb[0].mxu0
      %v488 = vadd.f32 %v317, %v487
      %v489 = vpop.f32.mrb[0].mxu0
      %490 = vmatprep.mubr.f32.mxu0 0.0
      %491 = vmatmul.mubr.f32.gmra.mrb[0].mxu0 %v327
      %v492 = vpop.f32.mrb[0].mxu0
      %v493 = vadd.f32 %v317, %v492
      %v494 = vpop.f32.mrb[0].mxu0
      %495 = vmatprep.mubr.f32.mxu0 0.0
      %496 = vmatmul.mubr.f32.gmra.mrb[0].mxu0 %v330
      %v497 = vpop.f32.mrb[0].mxu0
      %v498 = vadd.f32 %v317, %v497
      %v499 = vpop.f32.mrb[0].mxu0
      %500 = vmatprep.mubr.f32.mxu0 0.0
      %501 = vmatmul.mubr.f32.gmra.mrb[0].mxu0 %v333
      %v502 = vpop.f32.mrb[0].mxu0
      %v503 = vadd.f32 %v317, %v502
      %v504 = vpop.f32.mrb[0].mxu0
      %505 = vmatprep.mubr.f32.mxu0 0.0
      %506 = vmatmul.mubr.f32.gmra.mrb[0].mxu0 %v336
      %v507 = vpop.f32.mrb[0].mxu0
      %v508 = vadd.f32 %v317, %v507
      %v509 = vpop.f32.mrb[0].mxu0
      %510 = vmatprep.mubr.f32.mxu0 0.0
      %511 = vmatmul.mubr.f32.gmra.mrb[0].mxu0 %v339
      %v512 = vpop.f32.mrb[0].mxu0
      %v513 = vadd.f32 %v317, %v512
      %v514 = vpop.f32.mrb[0].mxu0
      %515 = vmatprep.mubr.f32.mxu0 0.0
      %516 = vmatmul.mubr.f32.gmra.mrb[0].mxu0 %v342
      %v517 = vpop.f32.mrb[0].mxu0
      %v518 = vadd.f32 %v317, %v517
      %v519 = vpop.f32.mrb[0].mxu0
      %520 = vmatprep.mubr.f32.mxu0 0.0
      %521 = vmatmul.mubr.f32.gmra.mrb[0].mxu0 %v345
      %v522 = vpop.f32.mrb[0].mxu0
      %v523 = vadd.f32 %v317, %v522
      %v524 = vpop.f32.mrb[0].mxu0
      %525 = vmatprep.mubr.f32.mxu0 0.0
      %526 = vmatmul.mubr.f32.gmra.mrb[0].mxu0 %v348
      %v527 = vpop.f32.mrb[0].mxu0
      %v528 = vadd.f32 %v317, %v527
      %v529 = vpop.f32.mrb[0].mxu0
      %530 = vmatprep.mubr.f32.mxu0 0.0
      %531 = vmatmul.mubr.f32.gmra.mrb[0].mxu0 %v351
      %v532 = vpop.f32.mrb[0].mxu0
      %v533 = vadd.f32 %v317, %v532
      %v534 = vpop.f32.mrb[0].mxu0
      %535 = vmatprep.mubr.f32.mxu0 0.0
      %536 = vmatmul.mubr.f32.gmra.mrb[0].mxu0 %v354
      %v537 = vpop.f32.mrb[0].mxu0
      %v538 = vadd.f32 %v317, %v537
      %v539 = vpop.f32.mrb[0].mxu0
      %540 = vmatprep.mubr.f32.mxu0 0.0
      %541 = vmatmul.mubr.f32.gmra.mrb[0].mxu0 %v357
      %v542 = vpop.f32.mrb[0].mxu0
      %v543 = vadd.f32 %v317, %v542
      %v544 = vpop.f32.mrb[0].mxu0
      %545 = vmatprep.mubr.f32.mxu0 0.0
      %546 = vmatmul.mubr.f32.gmra.mrb[0].mxu0 %v360
      %v547 = vpop.f32.mrb[0].mxu0
      %v548 = vadd.f32 %v317, %v547
      %v549 = vpop.f32.mrb[0].mxu0
      %550 = vmatprep.mubr.f32.mxu0 0.0
      %551 = vmatmul.mubr.f32.gmra.mrb[0].mxu0 %v363
      %v552 = vpop.f32.mrb[0].mxu0
      %v553 = vadd.f32 %v317, %v552
      %v554 = vpop.f32.mrb[0].mxu0
      %555 = vmatprep.mubr.f32.mxu0 0.0
      %556 = vmatmul.mubr.f32.gmra.mrb[0].mxu0 %v366
      %v557 = vpop.f32.mrb[0].mxu0
      %v558 = vadd.f32 %v317, %v557
      %v559 = vpop.f32.mrb[0].mxu0
      %560 = vmatprep.mubr.f32.mxu0 0.0
      %561 = vmatmul.mubr.f32.gmra.mrb[0].mxu0 %v369
      %v562 = vpop.f32.mrb[0].mxu0
      %v563 = vadd.f32 %v317, %v562
      %v564 = vpop.f32.mrb[0].mxu0
      %565 = vmatprep.mubr.f32.mxu0 0.0
      %566 = vmatmul.mubr.f32.gmra.mrb[0].mxu0 %v372
      %v567 = vpop.f32.mrb[0].mxu0
      %v568 = vadd.f32 %v317, %v567
      %v569 = vpop.f32.mrb[0].mxu0
      %570 = vmatprep.mubr.f32.mxu0 0.0
      %571 = vmatmul.mubr.f32.gmra.mrb[0].mxu0 %v375
      %v572 = vpop.f32.mrb[0].mxu0
      %v573 = vadd.f32 %v317, %v572
      %v574 = vpop.f32.mrb[0].mxu0
      %575 = vmatprep.mubr.f32.mxu0 0.0
      %576 = vmatmul.mubr.f32.gmra.mrb[0].mxu0 %v378
      %v577 = vpop.f32.mrb[0].mxu0
      %v578 = vadd.f32 %v317, %v577
      %v579 = vpop.f32.mrb[0].mxu0
      %580 = vmatprep.mubr.f32.mxu0 0.0
      %581 = vmatmul.mubr.f32.gmra.mrb[0].mxu0 %v381
      %v582 = vpop.f32.mrb[0].mxu0
      %v583 = vadd.f32 %v317, %v582
      %v584 = vpop.f32.mrb[0].mxu0
      %585 = vmatprep.mubr.f32.mxu0 0.0
      %586 = vmatmul.mubr.f32.gmra.mrb[0].mxu0 %v384
      %v587 = vpop.f32.mrb[0].mxu0
      %v588 = vadd.f32 %v317, %v587
      %v589 = vpop.f32.mrb[0].mxu0
      %590 = vmatprep.mubr.f32.mxu0 0.0
      %591 = vmatmul.mubr.f32.gmra.mrb[0].mxu0 %v387
      %v592 = vpop.f32.mrb[0].mxu0
      %v593 = vadd.f32 %v317, %v592
      %v594 = vpop.f32.mrb[0].mxu0
      %595 = vmatprep.mubr.f32.mxu0 0.0
      %596 = vmatmul.mubr.f32.gmra.mrb[0].mxu0 %v390
      %v597 = vpop.f32.mrb[0].mxu0
      %v598 = vadd.f32 %v317, %v597
      %v599 = vpop.f32.mrb[0].mxu0
      %600 = vmatprep.mubr.f32.mxu0 0.0
      %601 = vmatmul.mubr.f32.gmra.mrb[0].mxu0 %v393
      %v602 = vpop.f32.mrb[0].mxu0
      %v603 = vadd.f32 %v317, %v602
      %v604 = vpop.f32.mrb[0].mxu0
      %605 = vmatprep.mubr.f32.mxu0 0.0
      %606 = vmatmul.mubr.f32.gmra.mrb[0].mxu0 %v396
      %v607 = vpop.f32.mrb[0].mxu0
      %v608 = vadd.f32 %v317, %v607
      %v609 = vpop.f32.mrb[0].mxu0
      %610 = vmatprep.mubr.f32.mxu0 0.0
      %611 = vmatmul.mubr.f32.gmra.mrb[0].mxu0 %v399
      %v612 = vpop.f32.mrb[0].mxu0
      %v613 = vadd.f32 %v317, %v612
      %v614 = vpop.f32.mrb[0].mxu0
      %615 = vmatprep.mubr.f32.mxu0 0.0
      %616 = vmatmul.mubr.f32.gmra.mrb[0].mxu0 %v402
      %v617 = vpop.f32.mrb[0].mxu0
      %v618 = vadd.f32 %v317, %v617
      %v619 = vpop.f32.mrb[0].mxu0
      %620 = vmatprep.mubr.f32.mxu0 0.0
      %621 = vmatmul.mubr.f32.gmra.mrb[0].mxu0 %v405
      %v622 = vpop.f32.mrb[0].mxu0
      %v623 = vadd.f32 %v317, %v622
      %v624 = vpop.f32.mrb[0].mxu0
      %625 = vmatprep.mubr.f32.mxu0 0.0
      %626 = vmatmul.mubr.f32.gmra.mrb[0].mxu0 %v408
      %v627 = vpop.f32.mrb[0].mxu0
      %v628 = vadd.f32 %v317, %v627
      %v629 = vpop.f32.mrb[0].mxu0
      %630 = vmatprep.mubr.f32.mxu0 0.0
      %631 = vmatmul.mubr.f32.gmra.mrb[0].mxu0 %v411
      %v632 = vpop.f32.mrb[0].mxu0
      %v633 = vadd.f32 %v317, %v632
      %v634 = vpop.f32.mrb[0].mxu0
      %635 = vmatprep.mubr.f32.mxu0 0.0
      %636 = vmatmul.mubr.f32.gmra.mrb[0].mxu0 %v414
      %v637 = vpop.f32.mrb[0].mxu0
      %v638 = vadd.f32 %v317, %v637
      %v639 = vpop.f32.mrb[0].mxu0
      %640 = vdwg.mxu0
      %v641 = vmax.f32 %v483, 0.0
      %v642 = vmax.f32 %v488, 0.0
      %v643 = vmax.f32 %v493, 0.0
      %v644 = vmax.f32 %v498, 0.0
      %v645 = vmax.f32 %v503, 0.0
      %v646 = vmax.f32 %v508, 0.0
      %v647 = vmax.f32 %v513, 0.0
      %v648 = vmax.f32 %v518, 0.0
      %v649 = vmax.f32 %v523, 0.0
      %v650 = vmax.f32 %v528, 0.0
      %v651 = vmax.f32 %v533, 0.0
      %v652 = vmax.f32 %v538, 0.0
      %v653 = vmax.f32 %v543, 0.0
      %v654 = vmax.f32 %v548, 0.0
      %v655 = vmax.f32 %v553, 0.0
      %v656 = vmax.f32 %v558, 0.0
      %v657 = vmax.f32 %v563, 0.0
      %v658 = vmax.f32 %v568, 0.0
      %v659 = vmax.f32 %v573, 0.0
      %v660 = vmax.f32 %v578, 0.0
      %v661 = vmax.f32 %v583, 0.0
      %v662 = vmax.f32 %v588, 0.0
      %v663 = vmax.f32 %v593, 0.0
      %v664 = vmax.f32 %v598, 0.0
      %v665 = vmax.f32 %v603, 0.0
      %v666 = vmax.f32 %v608, 0.0
      %v667 = vmax.f32 %v613, 0.0
      %v668 = vmax.f32 %v618, 0.0
      %v669 = vmax.f32 %v623, 0.0
      %v670 = vmax.f32 %v628, 0.0
      %v671 = vmax.f32 %v633, 0.0
      %v672 = vmax.f32 %v638, 0.0
      %vm673 = vcmask 130048
      %674 = vst.msk [vmem:[#allocation2] sm:$0xff] %vm673, 0.0
      %675 = vst.msk [vmem:[#allocation2 + $0x8] sm:$0xff] %vm673, 0.0
      %676 = vst.msk [vmem:[#allocation2 + $0x10] sm:$0xff] %vm673, 0.0
      %677 = vst.msk [vmem:[#allocation2 + $0x18] sm:$0xff] %vm673, 0.0
      %678 = vst.msk [vmem:[#allocation2 + $0x20] sm:$0xff] %vm673, 0.0
      %679 = vst.msk [vmem:[#allocation2 + $0x28] sm:$0xff] %vm673, 0.0
      %680 = vst.msk [vmem:[#allocation2 + $0x30] sm:$0xff] %vm673, 0.0
      %681 = vst.msk [vmem:[#allocation2 + $0x38] sm:$0xff] %vm673, 0.0
      %682 = vst.msk [vmem:[#allocation2 + $0x40] sm:$0xff] %vm673, 0.0
      %683 = vst.msk [vmem:[#allocation2 + $0x48] sm:$0xff] %vm673, 0.0
      %684 = vst.msk [vmem:[#allocation2 + $0x50] sm:$0xff] %vm673, 0.0
      %685 = vst.msk [vmem:[#allocation2 + $0x58] sm:$0xff] %vm673, 0.0
      %686 = vst.msk [vmem:[#allocation2 + $0x60] sm:$0xff] %vm673, 0.0
      %687 = vst.msk [vmem:[#allocation2 + $0x68] sm:$0xff] %vm673, 0.0
      %688 = vst.msk [vmem:[#allocation2 + $0x70] sm:$0xff] %vm673, 0.0
      %689 = vst.msk [vmem:[#allocation2 + $0x78] sm:$0xff] %vm673, 0.0
      %690 = vst.msk [vmem:[#allocation2 + $0x80] sm:$0xff] %vm673, 0.0
      %691 = vst.msk [vmem:[#allocation2 + $0x88] sm:$0xff] %vm673, 0.0
      %692 = vst.msk [vmem:[#allocation2 + $0x90] sm:$0xff] %vm673, 0.0
      %693 = vst.msk [vmem:[#allocation2 + $0x98] sm:$0xff] %vm673, 0.0
      %694 = vst.msk [vmem:[#allocation2 + $0xa0] sm:$0xff] %vm673, 0.0
      %695 = vst.msk [vmem:[#allocation2 + $0xa8] sm:$0xff] %vm673, 0.0
      %696 = vst.msk [vmem:[#allocation2 + $0xb0] sm:$0xff] %vm673, 0.0
      %697 = vst.msk [vmem:[#allocation2 + $0xb8] sm:$0xff] %vm673, 0.0
      %698 = vst.msk [vmem:[#allocation2 + $0xc0] sm:$0xff] %vm673, 0.0
      %699 = vst.msk [vmem:[#allocation2 + $0xc8] sm:$0xff] %vm673, 0.0
      %700 = vst.msk [vmem:[#allocation2 + $0xd0] sm:$0xff] %vm673, 0.0
      %701 = vst.msk [vmem:[#allocation2 + $0xd8] sm:$0xff] %vm673, 0.0
      %702 = vst.msk [vmem:[#allocation2 + $0xe0] sm:$0xff] %vm673, 0.0
      %703 = vst.msk [vmem:[#allocation2 + $0xe8] sm:$0xff] %vm673, 0.0
      %704 = vst.msk [vmem:[#allocation2 + $0xf0] sm:$0xff] %vm673, 0.0
      %705 = vst.msk [vmem:[#allocation2 + $0xf8] sm:$0xff] %vm673, 0.0
      %706 = vst.msk [vmem:[#allocation2 + $0x100] sm:$0xff] %vm673, 0.0
      %707 = vst.msk [vmem:[#allocation2 + $0x108] sm:$0xff] %vm673, 0.0
      %708 = vst.msk [vmem:[#allocation2 + $0x110] sm:$0xff] %vm673, 0.0
      %709 = vst.msk [vmem:[#allocation2 + $0x118] sm:$0xff] %vm673, 0.0
      %710 = vst.msk [vmem:[#allocation2 + $0x120] sm:$0xff] %vm673, 0.0
      %711 = vst.msk [vmem:[#allocation2 + $0x128] sm:$0xff] %vm673, 0.0
      %712 = vst.msk [vmem:[#allocation2 + $0x130] sm:$0xff] %vm673, 0.0
      %713 = vst.msk [vmem:[#allocation2 + $0x138] sm:$0xff] %vm673, 0.0
      %714 = vst.msk [vmem:[#allocation2 + $0x140] sm:$0xff] %vm673, 0.0
      %715 = vst.msk [vmem:[#allocation2 + $0x148] sm:$0xff] %vm673, 0.0
      %716 = vst.msk [vmem:[#allocation2 + $0x150] sm:$0xff] %vm673, 0.0
      %717 = vst.msk [vmem:[#allocation2 + $0x158] sm:$0xff] %vm673, 0.0
      %718 = vst.msk [vmem:[#allocation2 + $0x160] sm:$0xff] %vm673, 0.0
      %719 = vst.msk [vmem:[#allocation2 + $0x168] sm:$0xff] %vm673, 0.0
      %720 = vst.msk [vmem:[#allocation2 + $0x170] sm:$0xff] %vm673, 0.0
      %721 = vst.msk [vmem:[#allocation2 + $0x178] sm:$0xff] %vm673, 0.0
      %722 = vst.msk [vmem:[#allocation2 + $0x180] sm:$0xff] %vm673, 0.0
      %723 = vst.msk [vmem:[#allocation2 + $0x188] sm:$0xff] %vm673, 0.0
      %724 = vst.msk [vmem:[#allocation2 + $0x190] sm:$0xff] %vm673, 0.0
      %725 = vst.msk [vmem:[#allocation2 + $0x198] sm:$0xff] %vm673, 0.0
      %726 = vst.msk [vmem:[#allocation2 + $0x1a0] sm:$0xff] %vm673, 0.0
      %727 = vst.msk [vmem:[#allocation2 + $0x1a8] sm:$0xff] %vm673, 0.0
      %728 = vst.msk [vmem:[#allocation2 + $0x1b0] sm:$0xff] %vm673, 0.0
      %729 = vst.msk [vmem:[#allocation2 + $0x1b8] sm:$0xff] %vm673, 0.0
      %730 = vst.msk [vmem:[#allocation2 + $0x1c0] sm:$0xff] %vm673, 0.0
      %731 = vst.msk [vmem:[#allocation2 + $0x1c8] sm:$0xff] %vm673, 0.0
      %732 = vst.msk [vmem:[#allocation2 + $0x1d0] sm:$0xff] %vm673, 0.0
      %733 = vst.msk [vmem:[#allocation2 + $0x1d8] sm:$0xff] %vm673, 0.0
      %734 = vst.msk [vmem:[#allocation2 + $0x1e0] sm:$0xff] %vm673, 0.0
      %735 = vst.msk [vmem:[#allocation2 + $0x1e8] sm:$0xff] %vm673, 0.0
      %736 = vst.msk [vmem:[#allocation2 + $0x1f0] sm:$0xff] %vm673, 0.0
      %737 = vst.msk [vmem:[#allocation2 + $0x1f8] sm:$0xff] %vm673, 0.0
      %738 = vst.msk [vmem:[#allocation2 + $0x200] sm:$0xff] %vm673, 0.0
      %739 = vst.msk [vmem:[#allocation2 + $0x208] sm:$0xff] %vm673, 0.0
      %740 = vst.msk [vmem:[#allocation2 + $0x210] sm:$0xff] %vm673, 0.0
      %741 = vst.msk [vmem:[#allocation2 + $0x218] sm:$0xff] %vm673, 0.0
      %742 = vst.msk [vmem:[#allocation2 + $0x220] sm:$0xff] %vm673, 0.0
      %743 = vst.msk [vmem:[#allocation2 + $0x228] sm:$0xff] %vm673, 0.0
      %744 = vst.msk [vmem:[#allocation2 + $0x230] sm:$0xff] %vm673, 0.0
      %745 = vst.msk [vmem:[#allocation2 + $0x238] sm:$0xff] %vm673, 0.0
      %s746 = scalar_lea.vmem [#allocation2], 32
      %747 = vst.msk [vmem:[%s746 + $0x8] sm:$0xff] %vm673, %v641
      %748 = vst.msk [vmem:[%s746 + $0x10] sm:$0xff] %vm673, %v642
      %749 = vst.msk [vmem:[%s746 + $0x28] sm:$0xff] %vm673, %v643
      %750 = vst.msk [vmem:[%s746 + $0x30] sm:$0xff] %vm673, %v644
      %751 = vst.msk [vmem:[%s746 + $0x48] sm:$0xff] %vm673, %v645
      %752 = vst.msk [vmem:[%s746 + $0x50] sm:$0xff] %vm673, %v646
      %753 = vst.msk [vmem:[%s746 + $0x68] sm:$0xff] %vm673, %v647
      %754 = vst.msk [vmem:[%s746 + $0x70] sm:$0xff] %vm673, %v648
      %755 = vst.msk [vmem:[%s746 + $0x88] sm:$0xff] %vm673, %v649
      %756 = vst.msk [vmem:[%s746 + $0x90] sm:$0xff] %vm673, %v650
      %757 = vst.msk [vmem:[%s746 + $0xa8] sm:$0xff] %vm673, %v651
      %758 = vst.msk [vmem:[%s746 + $0xb0] sm:$0xff] %vm673, %v652
      %759 = vst.msk [vmem:[%s746 + $0xc8] sm:$0xff] %vm673, %v653
      %760 = vst.msk [vmem:[%s746 + $0xd0] sm:$0xff] %vm673, %v654
      %761 = vst.msk [vmem:[%s746 + $0xe8] sm:$0xff] %vm673, %v655
      %762 = vst.msk [vmem:[%s746 + $0xf0] sm:$0xff] %vm673, %v656
      %763 = vst.msk [vmem:[%s746 + $0x108] sm:$0xff] %vm673, %v657
      %764 = vst.msk [vmem:[%s746 + $0x110] sm:$0xff] %vm673, %v658
      %765 = vst.msk [vmem:[%s746 + $0x128] sm:$0xff] %vm673, %v659
      %766 = vst.msk [vmem:[%s746 + $0x130] sm:$0xff] %vm673, %v660
      %767 = vst.msk [vmem:[%s746 + $0x148] sm:$0xff] %vm673, %v661
      %768 = vst.msk [vmem:[%s746 + $0x150] sm:$0xff] %vm673, %v662
      %769 = vst.msk [vmem:[%s746 + $0x168] sm:$0xff] %vm673, %v663
      %770 = vst.msk [vmem:[%s746 + $0x170] sm:$0xff] %vm673, %v664
      %771 = vst.msk [vmem:[%s746 + $0x188] sm:$0xff] %vm673, %v665
      %772 = vst.msk [vmem:[%s746 + $0x190] sm:$0xff] %vm673, %v666
      %773 = vst.msk [vmem:[%s746 + $0x1a8] sm:$0xff] %vm673, %v667
      %774 = vst.msk [vmem:[%s746 + $0x1b0] sm:$0xff] %vm673, %v668
      %775 = vst.msk [vmem:[%s746 + $0x1c8] sm:$0xff] %vm673, %v669
      %776 = vst.msk [vmem:[%s746 + $0x1d0] sm:$0xff] %vm673, %v670
      %777 = vst.msk [vmem:[%s746 + $0x1e8] sm:$0xff] %vm673, %v671
      %778 = vst.msk [vmem:[%s746 + $0x1f0] sm:$0xff] %vm673, %v672
      %v779 = vld [vmem:[#allocation2] sm:$0xff]
      %v780 = vld [vmem:[#allocation2 + $0x8] sm:$0xff]
      %v781 = vld [vmem:[#allocation2 + $0x10] sm:$0xff]
      %v782 = vld [vmem:[#allocation2 + $0x18] sm:$0xff]
      %v783 = vld [vmem:[#allocation2 + $0x20] sm:$0xff]
      %v784 = vld [vmem:[#allocation2 + $0x28] sm:$0xff]
      %v785 = vld [vmem:[#allocation2 + $0x30] sm:$0xff]
      %v786 = vld [vmem:[#allocation2 + $0x38] sm:$0xff]
      %v787 = vld [vmem:[#allocation2 + $0x40] sm:$0xff]
      %v788 = vld [vmem:[#allocation2 + $0x48] sm:$0xff]
      %v789 = vld [vmem:[#allocation2 + $0x50] sm:$0xff]
      %v790 = vld [vmem:[#allocation2 + $0x58] sm:$0xff]
      %v791 = vld [vmem:[#allocation2 + $0x60] sm:$0xff]
      %v792 = vld [vmem:[#allocation2 + $0x68] sm:$0xff]
      %v793 = vld [vmem:[#allocation2 + $0x70] sm:$0xff]
      %v794 = vld [vmem:[#allocation2 + $0x78] sm:$0xff]
      %v795 = vld [vmem:[#allocation2 + $0x80] sm:$0xff]
      %v796 = vld [vmem:[#allocation2 + $0x88] sm:$0xff]
      %v797 = vld [vmem:[#allocation2 + $0x90] sm:$0xff]
      %v798 = vld [vmem:[#allocation2 + $0x98] sm:$0xff]
      %v799 = vld [vmem:[#allocation2 + $0xa0] sm:$0xff]
      %v800 = vld [vmem:[#allocation2 + $0xa8] sm:$0xff]
      %v801 = vld [vmem:[#allocation2 + $0xb0] sm:$0xff]
      %v802 = vld [vmem:[#allocation2 + $0xb8] sm:$0xff]
      %v803 = vld [vmem:[#allocation2 + $0xc0] sm:$0xff]
      %v804 = vld [vmem:[#allocation2 + $0xc8] sm:$0xff]
      %v805 = vld [vmem:[#allocation2 + $0xd0] sm:$0xff]
      %v806 = vld [vmem:[#allocation2 + $0xd8] sm:$0xff]
      %v807 = vld [vmem:[#allocation2 + $0xe0] sm:$0xff]
      %v808 = vld [vmem:[#allocation2 + $0xe8] sm:$0xff]
      %v809 = vld [vmem:[#allocation2 + $0xf0] sm:$0xff]
      %v810 = vld [vmem:[#allocation2 + $0xf8] sm:$0xff]
      %v811 = vld [vmem:[#allocation2 + $0x100] sm:$0xff]
      %v812 = vld [vmem:[#allocation2 + $0x108] sm:$0xff]
      %v813 = vld [vmem:[#allocation2 + $0x110] sm:$0xff]
      %v814 = vld [vmem:[#allocation2 + $0x118] sm:$0xff]
      %v815 = vld [vmem:[#allocation2 + $0x120] sm:$0xff]
      %v816 = vld [vmem:[#allocation2 + $0x128] sm:$0xff]
      %v817 = vld [vmem:[#allocation2 + $0x130] sm:$0xff]
      %v818 = vld [vmem:[#allocation2 + $0x138] sm:$0xff]
      %v819 = vld [vmem:[#allocation2 + $0x140] sm:$0xff]
      %v820 = vld [vmem:[#allocation2 + $0x148] sm:$0xff]
      %v821 = vld [vmem:[#allocation2 + $0x150] sm:$0xff]
      %v822 = vld [vmem:[#allocation2 + $0x158] sm:$0xff]
      %v823 = vld [vmem:[#allocation2 + $0x160] sm:$0xff]
      %v824 = vld [vmem:[#allocation2 + $0x168] sm:$0xff]
      %v825 = vld [vmem:[#allocation2 + $0x170] sm:$0xff]
      %v826 = vld [vmem:[#allocation2 + $0x178] sm:$0xff]
      %v827 = vld [vmem:[#allocation2 + $0x180] sm:$0xff]
      %v828 = vld [vmem:[#allocation2 + $0x188] sm:$0xff]
      %v829 = vld [vmem:[#allocation2 + $0x190] sm:$0xff]
      %v830 = vld [vmem:[#allocation2 + $0x198] sm:$0xff]
      %v831 = vld [vmem:[#allocation2 + $0x1a0] sm:$0xff]
      %v832 = vld [vmem:[#allocation2 + $0x1a8] sm:$0xff]
      %v833 = vld [vmem:[#allocation2 + $0x1b0] sm:$0xff]
      %v834 = vld [vmem:[#allocation2 + $0x1b8] sm:$0xff]
      %v835 = vld [vmem:[#allocation2 + $0x1c0] sm:$0xff]
      %v836 = vld [vmem:[#allocation2 + $0x1c8] sm:$0xff]
      %v837 = vld [vmem:[#allocation2 + $0x1d0] sm:$0xff]
      %v838 = vld [vmem:[#allocation2 + $0x1d8] sm:$0xff]
      %v839 = vld [vmem:[#allocation2 + $0x1e0] sm:$0xff]
      %v840 = vld [vmem:[#allocation2 + $0x1e8] sm:$0xff]
      %v841 = vld [vmem:[#allocation2 + $0x1f0] sm:$0xff]
      %v842 = vld [vmem:[#allocation2 + $0x1f8] sm:$0xff]
      %v843 = vld [vmem:[#allocation2 + $0x200] sm:$0xff]
      %v844 = vld [vmem:[#allocation2 + $0x208] sm:$0xff]
      %v845 = vld [vmem:[#allocation2 + $0x210] sm:$0xff]
      %v846 = vld [vmem:[#allocation2 + $0x218] sm:$0xff]
      %v847 = vld [vmem:[#allocation2 + $0x220] sm:$0xff]
      %v848 = vld [vmem:[#allocation2 + $0x228] sm:$0xff]
      %v849 = vld [vmem:[#allocation2 + $0x230] sm:$0xff]
      %v850 = vld [vmem:[#allocation2 + $0x238] sm:$0xff]
      %v851 = vld [vmem:[%s3] sm:$0x7]
      %v852 = vld [vmem:[%s3 + $0x4] sm:$0x7]
      %v853 = vld [vmem:[%s3 + $0x8] sm:$0x7]
      %v854 = vlaneseq
      %v855 = vshrl.u32 %v854, 7
      %v856 = vsub.s32 0, %v855
      %v857 = vrot.slane %v851, %v856
      %v858 = vmul.f32 %v779, %v857
      %v859 = vmul.f32 %v780, %v857
      %v860 = vmul.f32 %v781, %v857
      %v861 = vmul.f32 %v783, %v857
      %v862 = vmul.f32 %v784, %v857
      %v863 = vmul.f32 %v785, %v857
      %v864 = vmul.f32 %v787, %v857
      %v865 = vmul.f32 %v788, %v857
      %v866 = vmul.f32 %v789, %v857
      %v867 = vmul.f32 %v791, %v857
      %v868 = vmul.f32 %v792, %v857
      %v869 = vmul.f32 %v793, %v857
      %v870 = vmul.f32 %v795, %v857
      %v871 = vmul.f32 %v796, %v857
      %v872 = vmul.f32 %v797, %v857
      %v873 = vmul.f32 %v799, %v857
      %v874 = vmul.f32 %v800, %v857
      %v875 = vmul.f32 %v801, %v857
      %v876 = vmul.f32 %v803, %v857
      %v877 = vmul.f32 %v804, %v857
      %v878 = vmul.f32 %v805, %v857
      %v879 = vmul.f32 %v807, %v857
      %v880 = vmul.f32 %v808, %v857
      %v881 = vmul.f32 %v809, %v857
      %v882 = vmul.f32 %v811, %v857
      %v883 = vmul.f32 %v812, %v857
      %v884 = vmul.f32 %v813, %v857
      %v885 = vmul.f32 %v815, %v857
      %v886 = vmul.f32 %v816, %v857
      %v887 = vmul.f32 %v817, %v857
      %v888 = vmul.f32 %v819, %v857
      %v889 = vmul.f32 %v820, %v857
      %v890 = vmul.f32 %v821, %v857
      %v891 = vmul.f32 %v823, %v857
      %v892 = vmul.f32 %v824, %v857
      %v893 = vmul.f32 %v825, %v857
      %v894 = vmul.f32 %v827, %v857
      %v895 = vmul.f32 %v828, %v857
      %v896 = vmul.f32 %v829, %v857
      %v897 = vmul.f32 %v831, %v857
      %v898 = vmul.f32 %v832, %v857
      %v899 = vmul.f32 %v833, %v857
      %v900 = vmul.f32 %v835, %v857
      %v901 = vmul.f32 %v836, %v857
      %v902 = vmul.f32 %v837, %v857
      %v903 = vmul.f32 %v839, %v857
      %v904 = vmul.f32 %v840, %v857
      %v905 = vmul.f32 %v841, %v857
      %v906 = vadd.f32 %v858, 0.0
      %v907 = vadd.f32 %v859, 0.0
      %v908 = vadd.f32 %v860, 0.0
      %v909 = vadd.f32 %v861, 0.0
      %v910 = vadd.f32 %v862, 0.0
      %v911 = vadd.f32 %v863, 0.0
      %v912 = vadd.f32 %v864, 0.0
      %v913 = vadd.f32 %v865, 0.0
      %v914 = vadd.f32 %v866, 0.0
      %v915 = vadd.f32 %v867, 0.0
      %v916 = vadd.f32 %v868, 0.0
      %v917 = vadd.f32 %v869, 0.0
      %v918 = vadd.f32 %v870, 0.0
      %v919 = vadd.f32 %v871, 0.0
      %v920 = vadd.f32 %v872, 0.0
      %v921 = vadd.f32 %v873, 0.0
      %v922 = vadd.f32 %v874, 0.0
      %v923 = vadd.f32 %v875, 0.0
      %v924 = vadd.f32 %v876, 0.0
      %v925 = vadd.f32 %v877, 0.0
      %v926 = vadd.f32 %v878, 0.0
      %v927 = vadd.f32 %v879, 0.0
      %v928 = vadd.f32 %v880, 0.0
      %v929 = vadd.f32 %v881, 0.0
      %v930 = vadd.f32 %v882, 0.0
      %v931 = vadd.f32 %v883, 0.0
      %v932 = vadd.f32 %v884, 0.0
      %v933 = vadd.f32 %v885, 0.0
      %v934 = vadd.f32 %v886, 0.0
      %v935 = vadd.f32 %v887, 0.0
      %v936 = vadd.f32 %v888, 0.0
      %v937 = vadd.f32 %v889, 0.0
      %v938 = vadd.f32 %v890, 0.0
      %v939 = vadd.f32 %v891, 0.0
      %v940 = vadd.f32 %v892, 0.0
      %v941 = vadd.f32 %v893, 0.0
      %v942 = vadd.f32 %v894, 0.0
      %v943 = vadd.f32 %v895, 0.0
      %v944 = vadd.f32 %v896, 0.0
      %v945 = vadd.f32 %v897, 0.0
      %v946 = vadd.f32 %v898, 0.0
      %v947 = vadd.f32 %v899, 0.0
      %v948 = vadd.f32 %v900, 0.0
      %v949 = vadd.f32 %v901, 0.0
      %v950 = vadd.f32 %v902, 0.0
      %v951 = vadd.f32 %v903, 0.0
      %v952 = vadd.f32 %v904, 0.0
      %v953 = vadd.f32 %v905, 0.0
      %v954 = vlaneseq
      %v955 = vshrl.u32 %v954, 7
      %v956 = vsub.s32 1, %v955
      %v957 = vrot.slane %v851, %v956
      %v958 = vmul.f32 %v780, %v957
      %v959 = vmul.f32 %v781, %v957
      %v960 = vmul.f32 %v784, %v957
      %v961 = vmul.f32 %v785, %v957
      %v962 = vmul.f32 %v788, %v957
      %v963 = vmul.f32 %v789, %v957
      %v964 = vmul.f32 %v792, %v957
      %v965 = vmul.f32 %v793, %v957
      %v966 = vmul.f32 %v796, %v957
      %v967 = vmul.f32 %v797, %v957
      %v968 = vmul.f32 %v800, %v957
      %v969 = vmul.f32 %v801, %v957
      %v970 = vmul.f32 %v804, %v957
      %v971 = vmul.f32 %v805, %v957
      %v972 = vmul.f32 %v808, %v957
      %v973 = vmul.f32 %v809, %v957
      %v974 = vmul.f32 %v812, %v957
      %v975 = vmul.f32 %v813, %v957
      %v976 = vmul.f32 %v816, %v957
      %v977 = vmul.f32 %v817, %v957
      %v978 = vmul.f32 %v820, %v957
      %v979 = vmul.f32 %v821, %v957
      %v980 = vmul.f32 %v824, %v957
      %v981 = vmul.f32 %v825, %v957
      %v982 = vmul.f32 %v828, %v957
      %v983 = vmul.f32 %v829, %v957
      %v984 = vmul.f32 %v832, %v957
      %v985 = vmul.f32 %v833, %v957
      %v986 = vmul.f32 %v836, %v957
      %v987 = vmul.f32 %v837, %v957
      %v988 = vmul.f32 %v840, %v957
      %v989 = vmul.f32 %v841, %v957
      %vm1022 = vcmask 1046528
      %v1023 = vrot.slane %v958, 1
      %v1024 = vrot.slane %v959, 1
      %v1025 = vsel %vm1022, %v1023, %v1024
      %v1026 = vrot.slane %v960, 1
      %v1027 = vrot.slane %v961, 1
      %v1028 = vsel %vm1022, %v1026, %v1027
      %v1029 = vrot.slane %v962, 1
      %v1030 = vrot.slane %v963, 1
      %v1031 = vsel %vm1022, %v1029, %v1030
      %v1032 = vrot.slane %v964, 1
      %v1033 = vrot.slane %v965, 1
      %v1034 = vsel %vm1022, %v1032, %v1033
      %v1035 = vrot.slane %v966, 1
      %v1036 = vrot.slane %v967, 1
      %v1037 = vsel %vm1022, %v1035, %v1036
      %v1038 = vrot.slane %v968, 1
      %v1039 = vrot.slane %v969, 1
      %v1040 = vsel %vm1022, %v1038, %v1039
      %v1041 = vrot.slane %v970, 1
      %v1042 = vrot.slane %v971, 1
      %v1043 = vsel %vm1022, %v1041, %v1042
      %v1044 = vrot.slane %v972, 1
      %v1045 = vrot.slane %v973, 1
      %v1046 = vsel %vm1022, %v1044, %v1045
      %v1047 = vrot.slane %v974, 1
      %v1048 = vrot.slane %v975, 1
      %v1049 = vsel %vm1022, %v1047, %v1048
      %v1050 = vrot.slane %v976, 1
      %v1051 = vrot.slane %v977, 1
      %v1052 = vsel %vm1022, %v1050, %v1051
      %v1053 = vrot.slane %v978, 1
      %v1054 = vrot.slane %v979, 1
      %v1055 = vsel %vm1022, %v1053, %v1054
      %v1056 = vrot.slane %v980, 1
      %v1057 = vrot.slane %v981, 1
      %v1058 = vsel %vm1022, %v1056, %v1057
      %v1059 = vrot.slane %v982, 1
      %v1060 = vrot.slane %v983, 1
      %v1061 = vsel %vm1022, %v1059, %v1060
      %v1062 = vrot.slane %v984, 1
      %v1063 = vrot.slane %v985, 1
      %v1064 = vsel %vm1022, %v1062, %v1063
      %v1065 = vrot.slane %v986, 1
      %v1066 = vrot.slane %v987, 1
      %v1067 = vsel %vm1022, %v1065, %v1066
      %v1068 = vrot.slane %v988, 1
      %v1069 = vrot.slane %v989, 1
      %v1070 = vsel %vm1022, %v1068, %v1069
      %v1119 = vadd.f32 %v906, %v1023
      %v1120 = vadd.f32 %v907, %v1025
      %v1121 = vadd.f32 %v908, %v1024
      %v1122 = vadd.f32 %v909, %v1026
      %v1123 = vadd.f32 %v910, %v1028
      %v1124 = vadd.f32 %v911, %v1027
      %v1125 = vadd.f32 %v912, %v1029
      %v1126 = vadd.f32 %v913, %v1031
      %v1127 = vadd.f32 %v914, %v1030
      %v1128 = vadd.f32 %v915, %v1032
      %v1129 = vadd.f32 %v916, %v1034
      %v1130 = vadd.f32 %v917, %v1033
      %v1131 = vadd.f32 %v918, %v1035
      %v1132 = vadd.f32 %v919, %v1037
      %v1133 = vadd.f32 %v920, %v1036
      %v1134 = vadd.f32 %v921, %v1038
      %v1135 = vadd.f32 %v922, %v1040
      %v1136 = vadd.f32 %v923, %v1039
      %v1137 = vadd.f32 %v924, %v1041
      %v1138 = vadd.f32 %v925, %v1043
      %v1139 = vadd.f32 %v926, %v1042
      %v1140 = vadd.f32 %v927, %v1044
      %v1141 = vadd.f32 %v928, %v1046
      %v1142 = vadd.f32 %v929, %v1045
      %v1143 = vadd.f32 %v930, %v1047
      %v1144 = vadd.f32 %v931, %v1049
      %v1145 = vadd.f32 %v932, %v1048
      %v1146 = vadd.f32 %v933, %v1050
      %v1147 = vadd.f32 %v934, %v1052
      %v1148 = vadd.f32 %v935, %v1051
      %v1149 = vadd.f32 %v936, %v1053
      %v1150 = vadd.f32 %v937, %v1055
      %v1151 = vadd.f32 %v938, %v1054
      %v1152 = vadd.f32 %v939, %v1056
      %v1153 = vadd.f32 %v940, %v1058
      %v1154 = vadd.f32 %v941, %v1057
      %v1155 = vadd.f32 %v942, %v1059
      %v1156 = vadd.f32 %v943, %v1061
      %v1157 = vadd.f32 %v944, %v1060
      %v1158 = vadd.f32 %v945, %v1062
      %v1159 = vadd.f32 %v946, %v1064
      %v1160 = vadd.f32 %v947, %v1063
      %v1161 = vadd.f32 %v948, %v1065
      %v1162 = vadd.f32 %v949, %v1067
      %v1163 = vadd.f32 %v950, %v1066
      %v1164 = vadd.f32 %v951, %v1068
      %v1165 = vadd.f32 %v952, %v1070
      %v1166 = vadd.f32 %v953, %v1069
      %v1167 = vlaneseq
      %v1168 = vshrl.u32 %v1167, 7
      %v1169 = vsub.s32 2, %v1168
      %v1170 = vrot.slane %v851, %v1169
      %v1171 = vmul.f32 %v780, %v1170
      %v1172 = vmul.f32 %v781, %v1170
      %v1173 = vmul.f32 %v782, %v1170
      %v1174 = vmul.f32 %v784, %v1170
      %v1175 = vmul.f32 %v785, %v1170
      %v1176 = vmul.f32 %v786, %v1170
      %v1177 = vmul.f32 %v788, %v1170
      %v1178 = vmul.f32 %v789, %v1170
      %v1179 = vmul.f32 %v790, %v1170
      %v1180 = vmul.f32 %v792, %v1170
      %v1181 = vmul.f32 %v793, %v1170
      %v1182 = vmul.f32 %v794, %v1170
      %v1183 = vmul.f32 %v796, %v1170
      %v1184 = vmul.f32 %v797, %v1170
      %v1185 = vmul.f32 %v798, %v1170
      %v1186 = vmul.f32 %v800, %v1170
      %v1187 = vmul.f32 %v801, %v1170
      %v1188 = vmul.f32 %v802, %v1170
      %v1189 = vmul.f32 %v804, %v1170
      %v1190 = vmul.f32 %v805, %v1170
      %v1191 = vmul.f32 %v806, %v1170
      %v1192 = vmul.f32 %v808, %v1170
      %v1193 = vmul.f32 %v809, %v1170
      %v1194 = vmul.f32 %v810, %v1170
      %v1195 = vmul.f32 %v812, %v1170
      %v1196 = vmul.f32 %v813, %v1170
      %v1197 = vmul.f32 %v814, %v1170
      %v1198 = vmul.f32 %v816, %v1170
      %v1199 = vmul.f32 %v817, %v1170
      %v1200 = vmul.f32 %v818, %v1170
      %v1201 = vmul.f32 %v820, %v1170
      %v1202 = vmul.f32 %v821, %v1170
      %v1203 = vmul.f32 %v822, %v1170
      %v1204 = vmul.f32 %v824, %v1170
      %v1205 = vmul.f32 %v825, %v1170
      %v1206 = vmul.f32 %v826, %v1170
      %v1207 = vmul.f32 %v828, %v1170
      %v1208 = vmul.f32 %v829, %v1170
      %v1209 = vmul.f32 %v830, %v1170
      %v1210 = vmul.f32 %v832, %v1170
      %v1211 = vmul.f32 %v833, %v1170
      %v1212 = vmul.f32 %v834, %v1170
      %v1213 = vmul.f32 %v836, %v1170
      %v1214 = vmul.f32 %v837, %v1170
      %v1215 = vmul.f32 %v838, %v1170
      %v1216 = vmul.f32 %v840, %v1170
      %v1217 = vmul.f32 %v841, %v1170
      %v1218 = vmul.f32 %v842, %v1170
      %vm1267 = vcmask 1045504
      %v1268 = vrot.slane %v1171, 2
      %v1269 = vrot.slane %v1172, 2
      %v1270 = vsel %vm1267, %v1268, %v1269
      %v1271 = vrot.slane %v1173, 2
      %v1272 = vsel %vm1267, %v1269, %v1271
      %v1273 = vrot.slane %v1174, 2
      %v1274 = vrot.slane %v1175, 2
      %v1275 = vsel %vm1267, %v1273, %v1274
      %v1276 = vrot.slane %v1176, 2
      %v1277 = vsel %vm1267, %v1274, %v1276
      %v1278 = vrot.slane %v1177, 2
      %v1279 = vrot.slane %v1178, 2
      %v1280 = vsel %vm1267, %v1278, %v1279
      %v1281 = vrot.slane %v1179, 2
      %v1282 = vsel %vm1267, %v1279, %v1281
      %v1283 = vrot.slane %v1180, 2
      %v1284 = vrot.slane %v1181, 2
      %v1285 = vsel %vm1267, %v1283, %v1284
      %v1286 = vrot.slane %v1182, 2
      %v1287 = vsel %vm1267, %v1284, %v1286
      %v1288 = vrot.slane %v1183, 2
      %v1289 = vrot.slane %v1184, 2
      %v1290 = vsel %vm1267, %v1288, %v1289
      %v1291 = vrot.slane %v1185, 2
      %v1292 = vsel %vm1267, %v1289, %v1291
      %v1293 = vrot.slane %v1186, 2
      %v1294 = vrot.slane %v1187, 2
      %v1295 = vsel %vm1267, %v1293, %v1294
      %v1296 = vrot.slane %v1188, 2
      %v1297 = vsel %vm1267, %v1294, %v1296
      %v1298 = vrot.slane %v1189, 2
      %v1299 = vrot.slane %v1190, 2
      %v1300 = vsel %vm1267, %v1298, %v1299
      %v1301 = vrot.slane %v1191, 2
      %v1302 = vsel %vm1267, %v1299, %v1301
      %v1303 = vrot.slane %v1192, 2
      %v1304 = vrot.slane %v1193, 2
      %v1305 = vsel %vm1267, %v1303, %v1304
      %v1306 = vrot.slane %v1194, 2
      %v1307 = vsel %vm1267, %v1304, %v1306
      %v1308 = vrot.slane %v1195, 2
      %v1309 = vrot.slane %v1196, 2
      %v1310 = vsel %vm1267, %v1308, %v1309
      %v1311 = vrot.slane %v1197, 2
      %v1312 = vsel %vm1267, %v1309, %v1311
      %v1313 = vrot.slane %v1198, 2
      %v1314 = vrot.slane %v1199, 2
      %v1315 = vsel %vm1267, %v1313, %v1314
      %v1316 = vrot.slane %v1200, 2
      %v1317 = vsel %vm1267, %v1314, %v1316
      %v1318 = vrot.slane %v1201, 2
      %v1319 = vrot.slane %v1202, 2
      %v1320 = vsel %vm1267, %v1318, %v1319
      %v1321 = vrot.slane %v1203, 2
      %v1322 = vsel %vm1267, %v1319, %v1321
      %v1323 = vrot.slane %v1204, 2
      %v1324 = vrot.slane %v1205, 2
      %v1325 = vsel %vm1267, %v1323, %v1324
      %v1326 = vrot.slane %v1206, 2
      %v1327 = vsel %vm1267, %v1324, %v1326
      %v1328 = vrot.slane %v1207, 2
      %v1329 = vrot.slane %v1208, 2
      %v1330 = vsel %vm1267, %v1328, %v1329
      %v1331 = vrot.slane %v1209, 2
      %v1332 = vsel %vm1267, %v1329, %v1331
      %v1333 = vrot.slane %v1210, 2
      %v1334 = vrot.slane %v1211, 2
      %v1335 = vsel %vm1267, %v1333, %v1334
      %v1336 = vrot.slane %v1212, 2
      %v1337 = vsel %vm1267, %v1334, %v1336
      %v1338 = vrot.slane %v1213, 2
      %v1339 = vrot.slane %v1214, 2
      %v1340 = vsel %vm1267, %v1338, %v1339
      %v1341 = vrot.slane %v1215, 2
      %v1342 = vsel %vm1267, %v1339, %v1341
      %v1343 = vrot.slane %v1216, 2
      %v1344 = vrot.slane %v1217, 2
      %v1345 = vsel %vm1267, %v1343, %v1344
      %v1346 = vrot.slane %v1218, 2
      %v1347 = vsel %vm1267, %v1344, %v1346
      %v1396 = vadd.f32 %v1119, %v1268
      %v1397 = vadd.f32 %v1120, %v1270
      %v1398 = vadd.f32 %v1121, %v1272
      %v1399 = vadd.f32 %v1122, %v1273
      %v1400 = vadd.f32 %v1123, %v1275
      %v1401 = vadd.f32 %v1124, %v1277
      %v1402 = vadd.f32 %v1125, %v1278
      %v1403 = vadd.f32 %v1126, %v1280
      %v1404 = vadd.f32 %v1127, %v1282
      %v1405 = vadd.f32 %v1128, %v1283
      %v1406 = vadd.f32 %v1129, %v1285
      %v1407 = vadd.f32 %v1130, %v1287
      %v1408 = vadd.f32 %v1131, %v1288
      %v1409 = vadd.f32 %v1132, %v1290
      %v1410 = vadd.f32 %v1133, %v1292
      %v1411 = vadd.f32 %v1134, %v1293
      %v1412 = vadd.f32 %v1135, %v1295
      %v1413 = vadd.f32 %v1136, %v1297
      %v1414 = vadd.f32 %v1137, %v1298
      %v1415 = vadd.f32 %v1138, %v1300
      %v1416 = vadd.f32 %v1139, %v1302
      %v1417 = vadd.f32 %v1140, %v1303
      %v1418 = vadd.f32 %v1141, %v1305
      %v1419 = vadd.f32 %v1142, %v1307
      %v1420 = vadd.f32 %v1143, %v1308
      %v1421 = vadd.f32 %v1144, %v1310
      %v1422 = vadd.f32 %v1145, %v1312
      %v1423 = vadd.f32 %v1146, %v1313
      %v1424 = vadd.f32 %v1147, %v1315
      %v1425 = vadd.f32 %v1148, %v1317
      %v1426 = vadd.f32 %v1149, %v1318
      %v1427 = vadd.f32 %v1150, %v1320
      %v1428 = vadd.f32 %v1151, %v1322
      %v1429 = vadd.f32 %v1152, %v1323
      %v1430 = vadd.f32 %v1153, %v1325
      %v1431 = vadd.f32 %v1154, %v1327
      %v1432 = vadd.f32 %v1155, %v1328
      %v1433 = vadd.f32 %v1156, %v1330
      %v1434 = vadd.f32 %v1157, %v1332
      %v1435 = vadd.f32 %v1158, %v1333
      %v1436 = vadd.f32 %v1159, %v1335
      %v1437 = vadd.f32 %v1160, %v1337
      %v1438 = vadd.f32 %v1161, %v1338
      %v1439 = vadd.f32 %v1162, %v1340
      %v1440 = vadd.f32 %v1163, %v1342
      %v1441 = vadd.f32 %v1164, %v1343
      %v1442 = vadd.f32 %v1165, %v1345
      %v1443 = vadd.f32 %v1166, %v1347
      %v1444 = vlaneseq
      %v1445 = vshrl.u32 %v1444, 7
      %v1446 = vsub.s32 0, %v1445
      %v1447 = vrot.slane %v852, %v1446
      %v1448 = vmul.f32 %v783, %v1447
      %v1449 = vmul.f32 %v784, %v1447
      %v1450 = vmul.f32 %v785, %v1447
      %v1451 = vmul.f32 %v787, %v1447
      %v1452 = vmul.f32 %v788, %v1447
      %v1453 = vmul.f32 %v789, %v1447
      %v1454 = vmul.f32 %v791, %v1447
      %v1455 = vmul.f32 %v792, %v1447
      %v1456 = vmul.f32 %v793, %v1447
      %v1457 = vmul.f32 %v795, %v1447
      %v1458 = vmul.f32 %v796, %v1447
      %v1459 = vmul.f32 %v797, %v1447
      %v1460 = vmul.f32 %v799, %v1447
      %v1461 = vmul.f32 %v800, %v1447
      %v1462 = vmul.f32 %v801, %v1447
      %v1463 = vmul.f32 %v803, %v1447
      %v1464 = vmul.f32 %v804, %v1447
      %v1465 = vmul.f32 %v805, %v1447
      %v1466 = vmul.f32 %v807, %v1447
      %v1467 = vmul.f32 %v808, %v1447
      %v1468 = vmul.f32 %v809, %v1447
      %v1469 = vmul.f32 %v811, %v1447
      %v1470 = vmul.f32 %v812, %v1447
      %v1471 = vmul.f32 %v813, %v1447
      %v1472 = vmul.f32 %v815, %v1447
      %v1473 = vmul.f32 %v816, %v1447
      %v1474 = vmul.f32 %v817, %v1447
      %v1475 = vmul.f32 %v819, %v1447
      %v1476 = vmul.f32 %v820, %v1447
      %v1477 = vmul.f32 %v821, %v1447
      %v1478 = vmul.f32 %v823, %v1447
      %v1479 = vmul.f32 %v824, %v1447
      %v1480 = vmul.f32 %v825, %v1447
      %v1481 = vmul.f32 %v827, %v1447
      %v1482 = vmul.f32 %v828, %v1447
      %v1483 = vmul.f32 %v829, %v1447
      %v1484 = vmul.f32 %v831, %v1447
      %v1485 = vmul.f32 %v832, %v1447
      %v1486 = vmul.f32 %v833, %v1447
      %v1487 = vmul.f32 %v835, %v1447
      %v1488 = vmul.f32 %v836, %v1447
      %v1489 = vmul.f32 %v837, %v1447
      %v1490 = vmul.f32 %v839, %v1447
      %v1491 = vmul.f32 %v840, %v1447
      %v1492 = vmul.f32 %v841, %v1447
      %v1493 = vmul.f32 %v843, %v1447
      %v1494 = vmul.f32 %v844, %v1447
      %v1495 = vmul.f32 %v845, %v1447
      %v1496 = vadd.f32 %v1396, %v1448
      %v1497 = vadd.f32 %v1397, %v1449
      %v1498 = vadd.f32 %v1398, %v1450
      %v1499 = vadd.f32 %v1399, %v1451
      %v1500 = vadd.f32 %v1400, %v1452
      %v1501 = vadd.f32 %v1401, %v1453
      %v1502 = vadd.f32 %v1402, %v1454
      %v1503 = vadd.f32 %v1403, %v1455
      %v1504 = vadd.f32 %v1404, %v1456
      %v1505 = vadd.f32 %v1405, %v1457
      %v1506 = vadd.f32 %v1406, %v1458
      %v1507 = vadd.f32 %v1407, %v1459
      %v1508 = vadd.f32 %v1408, %v1460
      %v1509 = vadd.f32 %v1409, %v1461
      %v1510 = vadd.f32 %v1410, %v1462
      %v1511 = vadd.f32 %v1411, %v1463
      %v1512 = vadd.f32 %v1412, %v1464
      %v1513 = vadd.f32 %v1413, %v1465
      %v1514 = vadd.f32 %v1414, %v1466
      %v1515 = vadd.f32 %v1415, %v1467
      %v1516 = vadd.f32 %v1416, %v1468
      %v1517 = vadd.f32 %v1417, %v1469
      %v1518 = vadd.f32 %v1418, %v1470
      %v1519 = vadd.f32 %v1419, %v1471
      %v1520 = vadd.f32 %v1420, %v1472
      %v1521 = vadd.f32 %v1421, %v1473
      %v1522 = vadd.f32 %v1422, %v1474
      %v1523 = vadd.f32 %v1423, %v1475
      %v1524 = vadd.f32 %v1424, %v1476
      %v1525 = vadd.f32 %v1425, %v1477
      %v1526 = vadd.f32 %v1426, %v1478
      %v1527 = vadd.f32 %v1427, %v1479
      %v1528 = vadd.f32 %v1428, %v1480
      %v1529 = vadd.f32 %v1429, %v1481
      %v1530 = vadd.f32 %v1430, %v1482
      %v1531 = vadd.f32 %v1431, %v1483
      %v1532 = vadd.f32 %v1432, %v1484
      %v1533 = vadd.f32 %v1433, %v1485
      %v1534 = vadd.f32 %v1434, %v1486
      %v1535 = vadd.f32 %v1435, %v1487
      %v1536 = vadd.f32 %v1436, %v1488
      %v1537 = vadd.f32 %v1437, %v1489
      %v1538 = vadd.f32 %v1438, %v1490
      %v1539 = vadd.f32 %v1439, %v1491
      %v1540 = vadd.f32 %v1440, %v1492
      %v1541 = vadd.f32 %v1441, %v1493
      %v1542 = vadd.f32 %v1442, %v1494
      %v1543 = vadd.f32 %v1443, %v1495
      %v1544 = vlaneseq
      %v1545 = vshrl.u32 %v1544, 7
      %v1546 = vsub.s32 1, %v1545
      %v1547 = vrot.slane %v852, %v1546
      %v1548 = vmul.f32 %v784, %v1547
      %v1549 = vmul.f32 %v785, %v1547
      %v1550 = vmul.f32 %v788, %v1547
      %v1551 = vmul.f32 %v789, %v1547
      %v1552 = vmul.f32 %v792, %v1547
      %v1553 = vmul.f32 %v793, %v1547
      %v1554 = vmul.f32 %v796, %v1547
      %v1555 = vmul.f32 %v797, %v1547
      %v1556 = vmul.f32 %v800, %v1547
      %v1557 = vmul.f32 %v801, %v1547
      %v1558 = vmul.f32 %v804, %v1547
      %v1559 = vmul.f32 %v805, %v1547
      %v1560 = vmul.f32 %v808, %v1547
      %v1561 = vmul.f32 %v809, %v1547
      %v1562 = vmul.f32 %v812, %v1547
      %v1563 = vmul.f32 %v813, %v1547
      %v1564 = vmul.f32 %v816, %v1547
      %v1565 = vmul.f32 %v817, %v1547
      %v1566 = vmul.f32 %v820, %v1547
      %v1567 = vmul.f32 %v821, %v1547
      %v1568 = vmul.f32 %v824, %v1547
      %v1569 = vmul.f32 %v825, %v1547
      %v1570 = vmul.f32 %v828, %v1547
      %v1571 = vmul.f32 %v829, %v1547
      %v1572 = vmul.f32 %v832, %v1547
      %v1573 = vmul.f32 %v833, %v1547
      %v1574 = vmul.f32 %v836, %v1547
      %v1575 = vmul.f32 %v837, %v1547
      %v1576 = vmul.f32 %v840, %v1547
      %v1577 = vmul.f32 %v841, %v1547
      %v1578 = vmul.f32 %v844, %v1547
      %v1579 = vmul.f32 %v845, %v1547
      %v1612 = vrot.slane %v1548, 1
      %v1613 = vrot.slane %v1549, 1
      %v1614 = vsel %vm1022, %v1612, %v1613
      %v1615 = vrot.slane %v1550, 1
      %v1616 = vrot.slane %v1551, 1
      %v1617 = vsel %vm1022, %v1615, %v1616
      %v1618 = vrot.slane %v1552, 1
      %v1619 = vrot.slane %v1553, 1
      %v1620 = vsel %vm1022, %v1618, %v1619
      %v1621 = vrot.slane %v1554, 1
      %v1622 = vrot.slane %v1555, 1
      %v1623 = vsel %vm1022, %v1621, %v1622
      %v1624 = vrot.slane %v1556, 1
      %v1625 = vrot.slane %v1557, 1
      %v1626 = vsel %vm1022, %v1624, %v1625
      %v1627 = vrot.slane %v1558, 1
      %v1628 = vrot.slane %v1559, 1
      %v1629 = vsel %vm1022, %v1627, %v1628
      %v1630 = vrot.slane %v1560, 1
      %v1631 = vrot.slane %v1561, 1
      %v1632 = vsel %vm1022, %v1630, %v1631
      %v1633 = vrot.slane %v1562, 1
      %v1634 = vrot.slane %v1563, 1
      %v1635 = vsel %vm1022, %v1633, %v1634
      %v1636 = vrot.slane %v1564, 1
      %v1637 = vrot.slane %v1565, 1
      %v1638 = vsel %vm1022, %v1636, %v1637
      %v1639 = vrot.slane %v1566, 1
      %v1640 = vrot.slane %v1567, 1
      %v1641 = vsel %vm1022, %v1639, %v1640
      %v1642 = vrot.slane %v1568, 1
      %v1643 = vrot.slane %v1569, 1
      %v1644 = vsel %vm1022, %v1642, %v1643
      %v1645 = vrot.slane %v1570, 1
      %v1646 = vrot.slane %v1571, 1
      %v1647 = vsel %vm1022, %v1645, %v1646
      %v1648 = vrot.slane %v1572, 1
      %v1649 = vrot.slane %v1573, 1
      %v1650 = vsel %vm1022, %v1648, %v1649
      %v1651 = vrot.slane %v1574, 1
      %v1652 = vrot.slane %v1575, 1
      %v1653 = vsel %vm1022, %v1651, %v1652
      %v1654 = vrot.slane %v1576, 1
      %v1655 = vrot.slane %v1577, 1
      %v1656 = vsel %vm1022, %v1654, %v1655
      %v1657 = vrot.slane %v1578, 1
      %v1658 = vrot.slane %v1579, 1
      %v1659 = vsel %vm1022, %v1657, %v1658
      %v1708 = vadd.f32 %v1496, %v1612
      %v1709 = vadd.f32 %v1497, %v1614
      %v1710 = vadd.f32 %v1498, %v1613
      %v1711 = vadd.f32 %v1499, %v1615
      %v1712 = vadd.f32 %v1500, %v1617
      %v1713 = vadd.f32 %v1501, %v1616
      %v1714 = vadd.f32 %v1502, %v1618
      %v1715 = vadd.f32 %v1503, %v1620
      %v1716 = vadd.f32 %v1504, %v1619
      %v1717 = vadd.f32 %v1505, %v1621
      %v1718 = vadd.f32 %v1506, %v1623
      %v1719 = vadd.f32 %v1507, %v1622
      %v1720 = vadd.f32 %v1508, %v1624
      %v1721 = vadd.f32 %v1509, %v1626
      %v1722 = vadd.f32 %v1510, %v1625
      %v1723 = vadd.f32 %v1511, %v1627
      %v1724 = vadd.f32 %v1512, %v1629
      %v1725 = vadd.f32 %v1513, %v1628
      %v1726 = vadd.f32 %v1514, %v1630
      %v1727 = vadd.f32 %v1515, %v1632
      %v1728 = vadd.f32 %v1516, %v1631
      %v1729 = vadd.f32 %v1517, %v1633
      %v1730 = vadd.f32 %v1518, %v1635
      %v1731 = vadd.f32 %v1519, %v1634
      %v1732 = vadd.f32 %v1520, %v1636
      %v1733 = vadd.f32 %v1521, %v1638
      %v1734 = vadd.f32 %v1522, %v1637
      %v1735 = vadd.f32 %v1523, %v1639
      %v1736 = vadd.f32 %v1524, %v1641
      %v1737 = vadd.f32 %v1525, %v1640
      %v1738 = vadd.f32 %v1526, %v1642
      %v1739 = vadd.f32 %v1527, %v1644
      %v1740 = vadd.f32 %v1528, %v1643
      %v1741 = vadd.f32 %v1529, %v1645
      %v1742 = vadd.f32 %v1530, %v1647
      %v1743 = vadd.f32 %v1531, %v1646
      %v1744 = vadd.f32 %v1532, %v1648
      %v1745 = vadd.f32 %v1533, %v1650
      %v1746 = vadd.f32 %v1534, %v1649
      %v1747 = vadd.f32 %v1535, %v1651
      %v1748 = vadd.f32 %v1536, %v1653
      %v1749 = vadd.f32 %v1537, %v1652
      %v1750 = vadd.f32 %v1538, %v1654
      %v1751 = vadd.f32 %v1539, %v1656
      %v1752 = vadd.f32 %v1540, %v1655
      %v1753 = vadd.f32 %v1541, %v1657
      %v1754 = vadd.f32 %v1542, %v1659
      %v1755 = vadd.f32 %v1543, %v1658
      %v1756 = vlaneseq
      %v1757 = vshrl.u32 %v1756, 7
      %v1758 = vsub.s32 2, %v1757
      %v1759 = vrot.slane %v852, %v1758
      %v1760 = vmul.f32 %v784, %v1759
      %v1761 = vmul.f32 %v785, %v1759
      %v1762 = vmul.f32 %v786, %v1759
      %v1763 = vmul.f32 %v788, %v1759
      %v1764 = vmul.f32 %v789, %v1759
      %v1765 = vmul.f32 %v790, %v1759
      %v1766 = vmul.f32 %v792, %v1759
      %v1767 = vmul.f32 %v793, %v1759
      %v1768 = vmul.f32 %v794, %v1759
      %v1769 = vmul.f32 %v796, %v1759
      %v1770 = vmul.f32 %v797, %v1759
      %v1771 = vmul.f32 %v798, %v1759
      %v1772 = vmul.f32 %v800, %v1759
      %v1773 = vmul.f32 %v801, %v1759
      %v1774 = vmul.f32 %v802, %v1759
      %v1775 = vmul.f32 %v804, %v1759
      %v1776 = vmul.f32 %v805, %v1759
      %v1777 = vmul.f32 %v806, %v1759
      %v1778 = vmul.f32 %v808, %v1759
      %v1779 = vmul.f32 %v809, %v1759
      %v1780 = vmul.f32 %v810, %v1759
      %v1781 = vmul.f32 %v812, %v1759
      %v1782 = vmul.f32 %v813, %v1759
      %v1783 = vmul.f32 %v814, %v1759
      %v1784 = vmul.f32 %v816, %v1759
      %v1785 = vmul.f32 %v817, %v1759
      %v1786 = vmul.f32 %v818, %v1759
      %v1787 = vmul.f32 %v820, %v1759
      %v1788 = vmul.f32 %v821, %v1759
      %v1789 = vmul.f32 %v822, %v1759
      %v1790 = vmul.f32 %v824, %v1759
      %v1791 = vmul.f32 %v825, %v1759
      %v1792 = vmul.f32 %v826, %v1759
      %v1793 = vmul.f32 %v828, %v1759
      %v1794 = vmul.f32 %v829, %v1759
      %v1795 = vmul.f32 %v830, %v1759
      %v1796 = vmul.f32 %v832, %v1759
      %v1797 = vmul.f32 %v833, %v1759
      %v1798 = vmul.f32 %v834, %v1759
      %v1799 = vmul.f32 %v836, %v1759
      %v1800 = vmul.f32 %v837, %v1759
      %v1801 = vmul.f32 %v838, %v1759
      %v1802 = vmul.f32 %v840, %v1759
      %v1803 = vmul.f32 %v841, %v1759
      %v1804 = vmul.f32 %v842, %v1759
      %v1805 = vmul.f32 %v844, %v1759
      %v1806 = vmul.f32 %v845, %v1759
      %v1807 = vmul.f32 %v846, %v1759
      %v1856 = vrot.slane %v1760, 2
      %v1857 = vrot.slane %v1761, 2
      %v1858 = vsel %vm1267, %v1856, %v1857
      %v1859 = vrot.slane %v1762, 2
      %v1860 = vsel %vm1267, %v1857, %v1859
      %v1861 = vrot.slane %v1763, 2
      %v1862 = vrot.slane %v1764, 2
      %v1863 = vsel %vm1267, %v1861, %v1862
      %v1864 = vrot.slane %v1765, 2
      %v1865 = vsel %vm1267, %v1862, %v1864
      %v1866 = vrot.slane %v1766, 2
      %v1867 = vrot.slane %v1767, 2
      %v1868 = vsel %vm1267, %v1866, %v1867
      %v1869 = vrot.slane %v1768, 2
      %v1870 = vsel %vm1267, %v1867, %v1869
      %v1871 = vrot.slane %v1769, 2
      %v1872 = vrot.slane %v1770, 2
      %v1873 = vsel %vm1267, %v1871, %v1872
      %v1874 = vrot.slane %v1771, 2
      %v1875 = vsel %vm1267, %v1872, %v1874
      %v1876 = vrot.slane %v1772, 2
      %v1877 = vrot.slane %v1773, 2
      %v1878 = vsel %vm1267, %v1876, %v1877
      %v1879 = vrot.slane %v1774, 2
      %v1880 = vsel %vm1267, %v1877, %v1879
      %v1881 = vrot.slane %v1775, 2
      %v1882 = vrot.slane %v1776, 2
      %v1883 = vsel %vm1267, %v1881, %v1882
      %v1884 = vrot.slane %v1777, 2
      %v1885 = vsel %vm1267, %v1882, %v1884
      %v1886 = vrot.slane %v1778, 2
      %v1887 = vrot.slane %v1779, 2
      %v1888 = vsel %vm1267, %v1886, %v1887
      %v1889 = vrot.slane %v1780, 2
      %v1890 = vsel %vm1267, %v1887, %v1889
      %v1891 = vrot.slane %v1781, 2
      %v1892 = vrot.slane %v1782, 2
      %v1893 = vsel %vm1267, %v1891, %v1892
      %v1894 = vrot.slane %v1783, 2
      %v1895 = vsel %vm1267, %v1892, %v1894
      %v1896 = vrot.slane %v1784, 2
      %v1897 = vrot.slane %v1785, 2
      %v1898 = vsel %vm1267, %v1896, %v1897
      %v1899 = vrot.slane %v1786, 2
      %v1900 = vsel %vm1267, %v1897, %v1899
      %v1901 = vrot.slane %v1787, 2
      %v1902 = vrot.slane %v1788, 2
      %v1903 = vsel %vm1267, %v1901, %v1902
      %v1904 = vrot.slane %v1789, 2
      %v1905 = vsel %vm1267, %v1902, %v1904
      %v1906 = vrot.slane %v1790, 2
      %v1907 = vrot.slane %v1791, 2
      %v1908 = vsel %vm1267, %v1906, %v1907
      %v1909 = vrot.slane %v1792, 2
      %v1910 = vsel %vm1267, %v1907, %v1909
      %v1911 = vrot.slane %v1793, 2
      %v1912 = vrot.slane %v1794, 2
      %v1913 = vsel %vm1267, %v1911, %v1912
      %v1914 = vrot.slane %v1795, 2
      %v1915 = vsel %vm1267, %v1912, %v1914
      %v1916 = vrot.slane %v1796, 2
      %v1917 = vrot.slane %v1797, 2
      %v1918 = vsel %vm1267, %v1916, %v1917
      %v1919 = vrot.slane %v1798, 2
      %v1920 = vsel %vm1267, %v1917, %v1919
      %v1921 = vrot.slane %v1799, 2
      %v1922 = vrot.slane %v1800, 2
      %v1923 = vsel %vm1267, %v1921, %v1922
      %v1924 = vrot.slane %v1801, 2
      %v1925 = vsel %vm1267, %v1922, %v1924
      %v1926 = vrot.slane %v1802, 2
      %v1927 = vrot.slane %v1803, 2
      %v1928 = vsel %vm1267, %v1926, %v1927
      %v1929 = vrot.slane %v1804, 2
      %v1930 = vsel %vm1267, %v1927, %v1929
      %v1931 = vrot.slane %v1805, 2
      %v1932 = vrot.slane %v1806, 2
      %v1933 = vsel %vm1267, %v1931, %v1932
      %v1934 = vrot.slane %v1807, 2
      %v1935 = vsel %vm1267, %v1932, %v1934
      %v1984 = vadd.f32 %v1708, %v1856
      %v1985 = vadd.f32 %v1709, %v1858
      %v1986 = vadd.f32 %v1710, %v1860
      %v1987 = vadd.f32 %v1711, %v1861
      %v1988 = vadd.f32 %v1712, %v1863
      %v1989 = vadd.f32 %v1713, %v1865
      %v1990 = vadd.f32 %v1714, %v1866
      %v1991 = vadd.f32 %v1715, %v1868
      %v1992 = vadd.f32 %v1716, %v1870
      %v1993 = vadd.f32 %v1717, %v1871
      %v1994 = vadd.f32 %v1718, %v1873
      %v1995 = vadd.f32 %v1719, %v1875
      %v1996 = vadd.f32 %v1720, %v1876
      %v1997 = vadd.f32 %v1721, %v1878
      %v1998 = vadd.f32 %v1722, %v1880
      %v1999 = vadd.f32 %v1723, %v1881
      %v2000 = vadd.f32 %v1724, %v1883
      %v2001 = vadd.f32 %v1725, %v1885
      %v2002 = vadd.f32 %v1726, %v1886
      %v2003 = vadd.f32 %v1727, %v1888
      %v2004 = vadd.f32 %v1728, %v1890
      %v2005 = vadd.f32 %v1729, %v1891
      %v2006 = vadd.f32 %v1730, %v1893
      %v2007 = vadd.f32 %v1731, %v1895
      %v2008 = vadd.f32 %v1732, %v1896
      %v2009 = vadd.f32 %v1733, %v1898
      %v2010 = vadd.f32 %v1734, %v1900
      %v2011 = vadd.f32 %v1735, %v1901
      %v2012 = vadd.f32 %v1736, %v1903
      %v2013 = vadd.f32 %v1737, %v1905
      %v2014 = vadd.f32 %v1738, %v1906
      %v2015 = vadd.f32 %v1739, %v1908
      %v2016 = vadd.f32 %v1740, %v1910
      %v2017 = vadd.f32 %v1741, %v1911
      %v2018 = vadd.f32 %v1742, %v1913
      %v2019 = vadd.f32 %v1743, %v1915
      %v2020 = vadd.f32 %v1744, %v1916
      %v2021 = vadd.f32 %v1745, %v1918
      %v2022 = vadd.f32 %v1746, %v1920
      %v2023 = vadd.f32 %v1747, %v1921
      %v2024 = vadd.f32 %v1748, %v1923
      %v2025 = vadd.f32 %v1749, %v1925
      %v2026 = vadd.f32 %v1750, %v1926
      %v2027 = vadd.f32 %v1751, %v1928
      %v2028 = vadd.f32 %v1752, %v1930
      %v2029 = vadd.f32 %v1753, %v1931
      %v2030 = vadd.f32 %v1754, %v1933
      %v2031 = vadd.f32 %v1755, %v1935
      %v2032 = vlaneseq
      %v2033 = vshrl.u32 %v2032, 7
      %v2034 = vsub.s32 0, %v2033
      %v2035 = vrot.slane %v853, %v2034
      %v2036 = vmul.f32 %v787, %v2035
      %v2037 = vmul.f32 %v788, %v2035
      %v2038 = vmul.f32 %v789, %v2035
      %v2039 = vmul.f32 %v791, %v2035
      %v2040 = vmul.f32 %v792, %v2035
      %v2041 = vmul.f32 %v793, %v2035
      %v2042 = vmul.f32 %v795, %v2035
      %v2043 = vmul.f32 %v796, %v2035
      %v2044 = vmul.f32 %v797, %v2035
      %v2045 = vmul.f32 %v799, %v2035
      %v2046 = vmul.f32 %v800, %v2035
      %v2047 = vmul.f32 %v801, %v2035
      %v2048 = vmul.f32 %v803, %v2035
      %v2049 = vmul.f32 %v804, %v2035
      %v2050 = vmul.f32 %v805, %v2035
      %v2051 = vmul.f32 %v807, %v2035
      %v2052 = vmul.f32 %v808, %v2035
      %v2053 = vmul.f32 %v809, %v2035
      %v2054 = vmul.f32 %v811, %v2035
      %v2055 = vmul.f32 %v812, %v2035
      %v2056 = vmul.f32 %v813, %v2035
      %v2057 = vmul.f32 %v815, %v2035
      %v2058 = vmul.f32 %v816, %v2035
      %v2059 = vmul.f32 %v817, %v2035
      %v2060 = vmul.f32 %v819, %v2035
      %v2061 = vmul.f32 %v820, %v2035
      %v2062 = vmul.f32 %v821, %v2035
      %v2063 = vmul.f32 %v823, %v2035
      %v2064 = vmul.f32 %v824, %v2035
      %v2065 = vmul.f32 %v825, %v2035
      %v2066 = vmul.f32 %v827, %v2035
      %v2067 = vmul.f32 %v828, %v2035
      %v2068 = vmul.f32 %v829, %v2035
      %v2069 = vmul.f32 %v831, %v2035
      %v2070 = vmul.f32 %v832, %v2035
      %v2071 = vmul.f32 %v833, %v2035
      %v2072 = vmul.f32 %v835, %v2035
      %v2073 = vmul.f32 %v836, %v2035
      %v2074 = vmul.f32 %v837, %v2035
      %v2075 = vmul.f32 %v839, %v2035
      %v2076 = vmul.f32 %v840, %v2035
      %v2077 = vmul.f32 %v841, %v2035
      %v2078 = vmul.f32 %v843, %v2035
      %v2079 = vmul.f32 %v844, %v2035
      %v2080 = vmul.f32 %v845, %v2035
      %v2081 = vmul.f32 %v847, %v2035
      %v2082 = vmul.f32 %v848, %v2035
      %v2083 = vmul.f32 %v849, %v2035
      %v2084 = vadd.f32 %v1984, %v2036
      %v2085 = vadd.f32 %v1985, %v2037
      %v2086 = vadd.f32 %v1986, %v2038
      %v2087 = vadd.f32 %v1987, %v2039
      %v2088 = vadd.f32 %v1988, %v2040
      %v2089 = vadd.f32 %v1989, %v2041
      %v2090 = vadd.f32 %v1990, %v2042
      %v2091 = vadd.f32 %v1991, %v2043
      %v2092 = vadd.f32 %v1992, %v2044
      %v2093 = vadd.f32 %v1993, %v2045
      %v2094 = vadd.f32 %v1994, %v2046
      %v2095 = vadd.f32 %v1995, %v2047
      %v2096 = vadd.f32 %v1996, %v2048
      %v2097 = vadd.f32 %v1997, %v2049
      %v2098 = vadd.f32 %v1998, %v2050
      %v2099 = vadd.f32 %v1999, %v2051
      %v2100 = vadd.f32 %v2000, %v2052
      %v2101 = vadd.f32 %v2001, %v2053
      %v2102 = vadd.f32 %v2002, %v2054
      %v2103 = vadd.f32 %v2003, %v2055
      %v2104 = vadd.f32 %v2004, %v2056
      %v2105 = vadd.f32 %v2005, %v2057
      %v2106 = vadd.f32 %v2006, %v2058
      %v2107 = vadd.f32 %v2007, %v2059
      %v2108 = vadd.f32 %v2008, %v2060
      %v2109 = vadd.f32 %v2009, %v2061
      %v2110 = vadd.f32 %v2010, %v2062
      %v2111 = vadd.f32 %v2011, %v2063
      %v2112 = vadd.f32 %v2012, %v2064
      %v2113 = vadd.f32 %v2013, %v2065
      %v2114 = vadd.f32 %v2014, %v2066
      %v2115 = vadd.f32 %v2015, %v2067
      %v2116 = vadd.f32 %v2016, %v2068
      %v2117 = vadd.f32 %v2017, %v2069
      %v2118 = vadd.f32 %v2018, %v2070
      %v2119 = vadd.f32 %v2019, %v2071
      %v2120 = vadd.f32 %v2020, %v2072
      %v2121 = vadd.f32 %v2021, %v2073
      %v2122 = vadd.f32 %v2022, %v2074
      %v2123 = vadd.f32 %v2023, %v2075
      %v2124 = vadd.f32 %v2024, %v2076
      %v2125 = vadd.f32 %v2025, %v2077
      %v2126 = vadd.f32 %v2026, %v2078
      %v2127 = vadd.f32 %v2027, %v2079
      %v2128 = vadd.f32 %v2028, %v2080
      %v2129 = vadd.f32 %v2029, %v2081
      %v2130 = vadd.f32 %v2030, %v2082
      %v2131 = vadd.f32 %v2031, %v2083
      %v2132 = vlaneseq
      %v2133 = vshrl.u32 %v2132, 7
      %v2134 = vsub.s32 1, %v2133
      %v2135 = vrot.slane %v853, %v2134
      %v2136 = vmul.f32 %v788, %v2135
      %v2137 = vmul.f32 %v789, %v2135
      %v2138 = vmul.f32 %v792, %v2135
      %v2139 = vmul.f32 %v793, %v2135
      %v2140 = vmul.f32 %v796, %v2135
      %v2141 = vmul.f32 %v797, %v2135
      %v2142 = vmul.f32 %v800, %v2135
      %v2143 = vmul.f32 %v801, %v2135
      %v2144 = vmul.f32 %v804, %v2135
      %v2145 = vmul.f32 %v805, %v2135
      %v2146 = vmul.f32 %v808, %v2135
      %v2147 = vmul.f32 %v809, %v2135
      %v2148 = vmul.f32 %v812, %v2135
      %v2149 = vmul.f32 %v813, %v2135
      %v2150 = vmul.f32 %v816, %v2135
      %v2151 = vmul.f32 %v817, %v2135
      %v2152 = vmul.f32 %v820, %v2135
      %v2153 = vmul.f32 %v821, %v2135
      %v2154 = vmul.f32 %v824, %v2135
      %v2155 = vmul.f32 %v825, %v2135
      %v2156 = vmul.f32 %v828, %v2135
      %v2157 = vmul.f32 %v829, %v2135
      %v2158 = vmul.f32 %v832, %v2135
      %v2159 = vmul.f32 %v833, %v2135
      %v2160 = vmul.f32 %v836, %v2135
      %v2161 = vmul.f32 %v837, %v2135
      %v2162 = vmul.f32 %v840, %v2135
      %v2163 = vmul.f32 %v841, %v2135
      %v2164 = vmul.f32 %v844, %v2135
      %v2165 = vmul.f32 %v845, %v2135
      %v2166 = vmul.f32 %v848, %v2135
      %v2167 = vmul.f32 %v849, %v2135
      %v2200 = vrot.slane %v2136, 1
      %v2201 = vrot.slane %v2137, 1
      %v2202 = vsel %vm1022, %v2200, %v2201
      %v2203 = vrot.slane %v2138, 1
      %v2204 = vrot.slane %v2139, 1
      %v2205 = vsel %vm1022, %v2203, %v2204
      %v2206 = vrot.slane %v2140, 1
      %v2207 = vrot.slane %v2141, 1
      %v2208 = vsel %vm1022, %v2206, %v2207
      %v2209 = vrot.slane %v2142, 1
      %v2210 = vrot.slane %v2143, 1
      %v2211 = vsel %vm1022, %v2209, %v2210
      %v2212 = vrot.slane %v2144, 1
      %v2213 = vrot.slane %v2145, 1
      %v2214 = vsel %vm1022, %v2212, %v2213
      %v2215 = vrot.slane %v2146, 1
      %v2216 = vrot.slane %v2147, 1
      %v2217 = vsel %vm1022, %v2215, %v2216
      %v2218 = vrot.slane %v2148, 1
      %v2219 = vrot.slane %v2149, 1
      %v2220 = vsel %vm1022, %v2218, %v2219
      %v2221 = vrot.slane %v2150, 1
      %v2222 = vrot.slane %v2151, 1
      %v2223 = vsel %vm1022, %v2221, %v2222
      %v2224 = vrot.slane %v2152, 1
      %v2225 = vrot.slane %v2153, 1
      %v2226 = vsel %vm1022, %v2224, %v2225
      %v2227 = vrot.slane %v2154, 1
      %v2228 = vrot.slane %v2155, 1
      %v2229 = vsel %vm1022, %v2227, %v2228
      %v2230 = vrot.slane %v2156, 1
      %v2231 = vrot.slane %v2157, 1
      %v2232 = vsel %vm1022, %v2230, %v2231
      %v2233 = vrot.slane %v2158, 1
      %v2234 = vrot.slane %v2159, 1
      %v2235 = vsel %vm1022, %v2233, %v2234
      %v2236 = vrot.slane %v2160, 1
      %v2237 = vrot.slane %v2161, 1
      %v2238 = vsel %vm1022, %v2236, %v2237
      %v2239 = vrot.slane %v2162, 1
      %v2240 = vrot.slane %v2163, 1
      %v2241 = vsel %vm1022, %v2239, %v2240
      %v2242 = vrot.slane %v2164, 1
      %v2243 = vrot.slane %v2165, 1
      %v2244 = vsel %vm1022, %v2242, %v2243
      %v2245 = vrot.slane %v2166, 1
      %v2246 = vrot.slane %v2167, 1
      %v2247 = vsel %vm1022, %v2245, %v2246
      %v2296 = vadd.f32 %v2084, %v2200
      %v2297 = vadd.f32 %v2085, %v2202
      %v2298 = vadd.f32 %v2086, %v2201
      %v2299 = vadd.f32 %v2087, %v2203
      %v2300 = vadd.f32 %v2088, %v2205
      %v2301 = vadd.f32 %v2089, %v2204
      %v2302 = vadd.f32 %v2090, %v2206
      %v2303 = vadd.f32 %v2091, %v2208
      %v2304 = vadd.f32 %v2092, %v2207
      %v2305 = vadd.f32 %v2093, %v2209
      %v2306 = vadd.f32 %v2094, %v2211
      %v2307 = vadd.f32 %v2095, %v2210
      %v2308 = vadd.f32 %v2096, %v2212
      %v2309 = vadd.f32 %v2097, %v2214
      %v2310 = vadd.f32 %v2098, %v2213
      %v2311 = vadd.f32 %v2099, %v2215
      %v2312 = vadd.f32 %v2100, %v2217
      %v2313 = vadd.f32 %v2101, %v2216
      %v2314 = vadd.f32 %v2102, %v2218
      %v2315 = vadd.f32 %v2103, %v2220
      %v2316 = vadd.f32 %v2104, %v2219
      %v2317 = vadd.f32 %v2105, %v2221
      %v2318 = vadd.f32 %v2106, %v2223
      %v2319 = vadd.f32 %v2107, %v2222
      %v2320 = vadd.f32 %v2108, %v2224
      %v2321 = vadd.f32 %v2109, %v2226
      %v2322 = vadd.f32 %v2110, %v2225
      %v2323 = vadd.f32 %v2111, %v2227
      %v2324 = vadd.f32 %v2112, %v2229
      %v2325 = vadd.f32 %v2113, %v2228
      %v2326 = vadd.f32 %v2114, %v2230
      %v2327 = vadd.f32 %v2115, %v2232
      %v2328 = vadd.f32 %v2116, %v2231
      %v2329 = vadd.f32 %v2117, %v2233
      %v2330 = vadd.f32 %v2118, %v2235
      %v2331 = vadd.f32 %v2119, %v2234
      %v2332 = vadd.f32 %v2120, %v2236
      %v2333 = vadd.f32 %v2121, %v2238
      %v2334 = vadd.f32 %v2122, %v2237
      %v2335 = vadd.f32 %v2123, %v2239
      %v2336 = vadd.f32 %v2124, %v2241
      %v2337 = vadd.f32 %v2125, %v2240
      %v2338 = vadd.f32 %v2126, %v2242
      %v2339 = vadd.f32 %v2127, %v2244
      %v2340 = vadd.f32 %v2128, %v2243
      %v2341 = vadd.f32 %v2129, %v2245
      %v2342 = vadd.f32 %v2130, %v2247
      %v2343 = vadd.f32 %v2131, %v2246
      %v2344 = vlaneseq
      %v2345 = vshrl.u32 %v2344, 7
      %v2346 = vsub.s32 2, %v2345
      %v2347 = vrot.slane %v853, %v2346
      %v2348 = vmul.f32 %v788, %v2347
      %v2349 = vmul.f32 %v789, %v2347
      %v2350 = vmul.f32 %v790, %v2347
      %v2351 = vmul.f32 %v792, %v2347
      %v2352 = vmul.f32 %v793, %v2347
      %v2353 = vmul.f32 %v794, %v2347
      %v2354 = vmul.f32 %v796, %v2347
      %v2355 = vmul.f32 %v797, %v2347
      %v2356 = vmul.f32 %v798, %v2347
      %v2357 = vmul.f32 %v800, %v2347
      %v2358 = vmul.f32 %v801, %v2347
      %v2359 = vmul.f32 %v802, %v2347
      %v2360 = vmul.f32 %v804, %v2347
      %v2361 = vmul.f32 %v805, %v2347
      %v2362 = vmul.f32 %v806, %v2347
      %v2363 = vmul.f32 %v808, %v2347
      %v2364 = vmul.f32 %v809, %v2347
      %v2365 = vmul.f32 %v810, %v2347
      %v2366 = vmul.f32 %v812, %v2347
      %v2367 = vmul.f32 %v813, %v2347
      %v2368 = vmul.f32 %v814, %v2347
      %v2369 = vmul.f32 %v816, %v2347
      %v2370 = vmul.f32 %v817, %v2347
      %v2371 = vmul.f32 %v818, %v2347
      %v2372 = vmul.f32 %v820, %v2347
      %v2373 = vmul.f32 %v821, %v2347
      %v2374 = vmul.f32 %v822, %v2347
      %v2375 = vmul.f32 %v824, %v2347
      %v2376 = vmul.f32 %v825, %v2347
      %v2377 = vmul.f32 %v826, %v2347
      %v2378 = vmul.f32 %v828, %v2347
      %v2379 = vmul.f32 %v829, %v2347
      %v2380 = vmul.f32 %v830, %v2347
      %v2381 = vmul.f32 %v832, %v2347
      %v2382 = vmul.f32 %v833, %v2347
      %v2383 = vmul.f32 %v834, %v2347
      %v2384 = vmul.f32 %v836, %v2347
      %v2385 = vmul.f32 %v837, %v2347
      %v2386 = vmul.f32 %v838, %v2347
      %v2387 = vmul.f32 %v840, %v2347
      %v2388 = vmul.f32 %v841, %v2347
      %v2389 = vmul.f32 %v842, %v2347
      %v2390 = vmul.f32 %v844, %v2347
      %v2391 = vmul.f32 %v845, %v2347
      %v2392 = vmul.f32 %v846, %v2347
      %v2393 = vmul.f32 %v848, %v2347
      %v2394 = vmul.f32 %v849, %v2347
      %v2395 = vmul.f32 %v850, %v2347
      %v2444 = vrot.slane %v2348, 2
      %v2445 = vrot.slane %v2349, 2
      %v2446 = vsel %vm1267, %v2444, %v2445
      %v2447 = vrot.slane %v2350, 2
      %v2448 = vsel %vm1267, %v2445, %v2447
      %v2449 = vrot.slane %v2351, 2
      %v2450 = vrot.slane %v2352, 2
      %v2451 = vsel %vm1267, %v2449, %v2450
      %v2452 = vrot.slane %v2353, 2
      %v2453 = vsel %vm1267, %v2450, %v2452
      %v2454 = vrot.slane %v2354, 2
      %v2455 = vrot.slane %v2355, 2
      %v2456 = vsel %vm1267, %v2454, %v2455
      %v2457 = vrot.slane %v2356, 2
      %v2458 = vsel %vm1267, %v2455, %v2457
      %v2459 = vrot.slane %v2357, 2
      %v2460 = vrot.slane %v2358, 2
      %v2461 = vsel %vm1267, %v2459, %v2460
      %v2462 = vrot.slane %v2359, 2
      %v2463 = vsel %vm1267, %v2460, %v2462
      %v2464 = vrot.slane %v2360, 2
      %v2465 = vrot.slane %v2361, 2
      %v2466 = vsel %vm1267, %v2464, %v2465
      %v2467 = vrot.slane %v2362, 2
      %v2468 = vsel %vm1267, %v2465, %v2467
      %v2469 = vrot.slane %v2363, 2
      %v2470 = vrot.slane %v2364, 2
      %v2471 = vsel %vm1267, %v2469, %v2470
      %v2472 = vrot.slane %v2365, 2
      %v2473 = vsel %vm1267, %v2470, %v2472
      %v2474 = vrot.slane %v2366, 2
      %v2475 = vrot.slane %v2367, 2
      %v2476 = vsel %vm1267, %v2474, %v2475
      %v2477 = vrot.slane %v2368, 2
      %v2478 = vsel %vm1267, %v2475, %v2477
      %v2479 = vrot.slane %v2369, 2
      %v2480 = vrot.slane %v2370, 2
      %v2481 = vsel %vm1267, %v2479, %v2480
      %v2482 = vrot.slane %v2371, 2
      %v2483 = vsel %vm1267, %v2480, %v2482
      %v2484 = vrot.slane %v2372, 2
      %v2485 = vrot.slane %v2373, 2
      %v2486 = vsel %vm1267, %v2484, %v2485
      %v2487 = vrot.slane %v2374, 2
      %v2488 = vsel %vm1267, %v2485, %v2487
      %v2489 = vrot.slane %v2375, 2
      %v2490 = vrot.slane %v2376, 2
      %v2491 = vsel %vm1267, %v2489, %v2490
      %v2492 = vrot.slane %v2377, 2
      %v2493 = vsel %vm1267, %v2490, %v2492
      %v2494 = vrot.slane %v2378, 2
      %v2495 = vrot.slane %v2379, 2
      %v2496 = vsel %vm1267, %v2494, %v2495
      %v2497 = vrot.slane %v2380, 2
      %v2498 = vsel %vm1267, %v2495, %v2497
      %v2499 = vrot.slane %v2381, 2
      %v2500 = vrot.slane %v2382, 2
      %v2501 = vsel %vm1267, %v2499, %v2500
      %v2502 = vrot.slane %v2383, 2
      %v2503 = vsel %vm1267, %v2500, %v2502
      %v2504 = vrot.slane %v2384, 2
      %v2505 = vrot.slane %v2385, 2
      %v2506 = vsel %vm1267, %v2504, %v2505
      %v2507 = vrot.slane %v2386, 2
      %v2508 = vsel %vm1267, %v2505, %v2507
      %v2509 = vrot.slane %v2387, 2
      %v2510 = vrot.slane %v2388, 2
      %v2511 = vsel %vm1267, %v2509, %v2510
      %v2512 = vrot.slane %v2389, 2
      %v2513 = vsel %vm1267, %v2510, %v2512
      %v2514 = vrot.slane %v2390, 2
      %v2515 = vrot.slane %v2391, 2
      %v2516 = vsel %vm1267, %v2514, %v2515
      %v2517 = vrot.slane %v2392, 2
      %v2518 = vsel %vm1267, %v2515, %v2517
      %v2519 = vrot.slane %v2393, 2
      %v2520 = vrot.slane %v2394, 2
      %v2521 = vsel %vm1267, %v2519, %v2520
      %v2522 = vrot.slane %v2395, 2
      %v2523 = vsel %vm1267, %v2520, %v2522
      %v2572 = vadd.f32 %v2296, %v2444
      %v2573 = vadd.f32 %v2297, %v2446
      %v2574 = vadd.f32 %v2298, %v2448
      %v2575 = vadd.f32 %v2299, %v2449
      %v2576 = vadd.f32 %v2300, %v2451
      %v2577 = vadd.f32 %v2301, %v2453
      %v2578 = vadd.f32 %v2302, %v2454
      %v2579 = vadd.f32 %v2303, %v2456
      %v2580 = vadd.f32 %v2304, %v2458
      %v2581 = vadd.f32 %v2305, %v2459
      %v2582 = vadd.f32 %v2306, %v2461
      %v2583 = vadd.f32 %v2307, %v2463
      %v2584 = vadd.f32 %v2308, %v2464
      %v2585 = vadd.f32 %v2309, %v2466
      %v2586 = vadd.f32 %v2310, %v2468
      %v2587 = vadd.f32 %v2311, %v2469
      %v2588 = vadd.f32 %v2312, %v2471
      %v2589 = vadd.f32 %v2313, %v2473
      %v2590 = vadd.f32 %v2314, %v2474
      %v2591 = vadd.f32 %v2315, %v2476
      %v2592 = vadd.f32 %v2316, %v2478
      %v2593 = vadd.f32 %v2317, %v2479
      %v2594 = vadd.f32 %v2318, %v2481
      %v2595 = vadd.f32 %v2319, %v2483
      %v2596 = vadd.f32 %v2320, %v2484
      %v2597 = vadd.f32 %v2321, %v2486
      %v2598 = vadd.f32 %v2322, %v2488
      %v2599 = vadd.f32 %v2323, %v2489
      %v2600 = vadd.f32 %v2324, %v2491
      %v2601 = vadd.f32 %v2325, %v2493
      %v2602 = vadd.f32 %v2326, %v2494
      %v2603 = vadd.f32 %v2327, %v2496
      %v2604 = vadd.f32 %v2328, %v2498
      %v2605 = vadd.f32 %v2329, %v2499
      %v2606 = vadd.f32 %v2330, %v2501
      %v2607 = vadd.f32 %v2331, %v2503
      %v2608 = vadd.f32 %v2332, %v2504
      %v2609 = vadd.f32 %v2333, %v2506
      %v2610 = vadd.f32 %v2334, %v2508
      %v2611 = vadd.f32 %v2335, %v2509
      %v2612 = vadd.f32 %v2336, %v2511
      %v2613 = vadd.f32 %v2337, %v2513
      %v2614 = vadd.f32 %v2338, %v2514
      %v2615 = vadd.f32 %v2339, %v2516
      %v2616 = vadd.f32 %v2340, %v2518
      %v2617 = vadd.f32 %v2341, %v2519
      %v2618 = vadd.f32 %v2342, %v2521
      %v2619 = vadd.f32 %v2343, %v2523
      %vm2668 = vcmask 1040384
      %v2669 = vrot.slane %v2572, 7
      %v2670 = vrot.slane %v2573, 7
      %v2671 = vsel %vm2668, %v2669, %v2670
      %v2672 = vrot.slane %v2574, 7
      %v2673 = vsel %vm2668, %v2670, %v2672
      %v2674 = vrot.slane %v2575, 7
      %v2675 = vrot.slane %v2576, 7
      %v2676 = vsel %vm2668, %v2674, %v2675
      %v2677 = vrot.slane %v2577, 7
      %v2678 = vsel %vm2668, %v2675, %v2677
      %v2679 = vrot.slane %v2578, 7
      %v2680 = vrot.slane %v2579, 7
      %v2681 = vsel %vm2668, %v2679, %v2680
      %v2682 = vrot.slane %v2580, 7
      %v2683 = vsel %vm2668, %v2680, %v2682
      %v2684 = vrot.slane %v2581, 7
      %v2685 = vrot.slane %v2582, 7
      %v2686 = vsel %vm2668, %v2684, %v2685
      %v2687 = vrot.slane %v2583, 7
      %v2688 = vsel %vm2668, %v2685, %v2687
      %v2689 = vrot.slane %v2584, 7
      %v2690 = vrot.slane %v2585, 7
      %v2691 = vsel %vm2668, %v2689, %v2690
      %v2692 = vrot.slane %v2586, 7
      %v2693 = vsel %vm2668, %v2690, %v2692
      %v2694 = vrot.slane %v2587, 7
      %v2695 = vrot.slane %v2588, 7
      %v2696 = vsel %vm2668, %v2694, %v2695
      %v2697 = vrot.slane %v2589, 7
      %v2698 = vsel %vm2668, %v2695, %v2697
      %v2699 = vrot.slane %v2590, 7
      %v2700 = vrot.slane %v2591, 7
      %v2701 = vsel %vm2668, %v2699, %v2700
      %v2702 = vrot.slane %v2592, 7
      %v2703 = vsel %vm2668, %v2700, %v2702
      %v2704 = vrot.slane %v2593, 7
      %v2705 = vrot.slane %v2594, 7
      %v2706 = vsel %vm2668, %v2704, %v2705
      %v2707 = vrot.slane %v2595, 7
      %v2708 = vsel %vm2668, %v2705, %v2707
      %v2709 = vrot.slane %v2596, 7
      %v2710 = vrot.slane %v2597, 7
      %v2711 = vsel %vm2668, %v2709, %v2710
      %v2712 = vrot.slane %v2598, 7
      %v2713 = vsel %vm2668, %v2710, %v2712
      %v2714 = vrot.slane %v2599, 7
      %v2715 = vrot.slane %v2600, 7
      %v2716 = vsel %vm2668, %v2714, %v2715
      %v2717 = vrot.slane %v2601, 7
      %v2718 = vsel %vm2668, %v2715, %v2717
      %v2719 = vrot.slane %v2602, 7
      %v2720 = vrot.slane %v2603, 7
      %v2721 = vsel %vm2668, %v2719, %v2720
      %v2722 = vrot.slane %v2604, 7
      %v2723 = vsel %vm2668, %v2720, %v2722
      %v2724 = vrot.slane %v2605, 7
      %v2725 = vrot.slane %v2606, 7
      %v2726 = vsel %vm2668, %v2724, %v2725
      %v2727 = vrot.slane %v2607, 7
      %v2728 = vsel %vm2668, %v2725, %v2727
      %v2729 = vrot.slane %v2608, 7
      %v2730 = vrot.slane %v2609, 7
      %v2731 = vsel %vm2668, %v2729, %v2730
      %v2732 = vrot.slane %v2610, 7
      %v2733 = vsel %vm2668, %v2730, %v2732
      %v2734 = vrot.slane %v2611, 7
      %v2735 = vrot.slane %v2612, 7
      %v2736 = vsel %vm2668, %v2734, %v2735
      %v2737 = vrot.slane %v2613, 7
      %v2738 = vsel %vm2668, %v2735, %v2737
      %v2739 = vrot.slane %v2614, 7
      %v2740 = vrot.slane %v2615, 7
      %v2741 = vsel %vm2668, %v2739, %v2740
      %v2742 = vrot.slane %v2616, 7
      %v2743 = vsel %vm2668, %v2740, %v2742
      %v2744 = vrot.slane %v2617, 7
      %v2745 = vrot.slane %v2618, 7
      %v2746 = vsel %vm2668, %v2744, %v2745
      %v2747 = vrot.slane %v2619, 7
      %v2748 = vsel %vm2668, %v2745, %v2747
      %v2781 = vld [vmem:[%s4] sm:$0x1]
      %v2783 = vlaneseq
      %v2784 = vshrl.u32 %v2783, 7
      %v2785 = vsub.s32 0, %v2784
      %v2786 = vrot.slane %v2781, %v2785
      %v2788 = vadd.f32 %v2671, %v2786
      %v2789 = vadd.f32 %v2673, %v2786
      %v2790 = vadd.f32 %v2676, %v2786
      %v2791 = vadd.f32 %v2678, %v2786
      %v2792 = vadd.f32 %v2681, %v2786
      %v2793 = vadd.f32 %v2683, %v2786
      %v2794 = vadd.f32 %v2686, %v2786
      %v2795 = vadd.f32 %v2688, %v2786
      %v2796 = vadd.f32 %v2691, %v2786
      %v2797 = vadd.f32 %v2693, %v2786
      %v2798 = vadd.f32 %v2696, %v2786
      %v2799 = vadd.f32 %v2698, %v2786
      %v2800 = vadd.f32 %v2701, %v2786
      %v2801 = vadd.f32 %v2703, %v2786
      %v2802 = vadd.f32 %v2706, %v2786
      %v2803 = vadd.f32 %v2708, %v2786
      %v2804 = vadd.f32 %v2711, %v2786
      %v2805 = vadd.f32 %v2713, %v2786
      %v2806 = vadd.f32 %v2716, %v2786
      %v2807 = vadd.f32 %v2718, %v2786
      %v2808 = vadd.f32 %v2721, %v2786
      %v2809 = vadd.f32 %v2723, %v2786
      %v2810 = vadd.f32 %v2726, %v2786
      %v2811 = vadd.f32 %v2728, %v2786
      %v2812 = vadd.f32 %v2731, %v2786
      %v2813 = vadd.f32 %v2733, %v2786
      %v2814 = vadd.f32 %v2736, %v2786
      %v2815 = vadd.f32 %v2738, %v2786
      %v2816 = vadd.f32 %v2741, %v2786
      %v2817 = vadd.f32 %v2743, %v2786
      %v2818 = vadd.f32 %v2746, %v2786
      %v2819 = vadd.f32 %v2748, %v2786
      %v2820 = vmax.f32 %v2788, 0.0
      %v2821 = vmax.f32 %v2789, 0.0
      %v2822 = vmax.f32 %v2790, 0.0
      %v2823 = vmax.f32 %v2791, 0.0
      %v2824 = vmax.f32 %v2792, 0.0
      %v2825 = vmax.f32 %v2793, 0.0
      %v2826 = vmax.f32 %v2794, 0.0
      %v2827 = vmax.f32 %v2795, 0.0
      %v2828 = vmax.f32 %v2796, 0.0
      %v2829 = vmax.f32 %v2797, 0.0
      %v2830 = vmax.f32 %v2798, 0.0
      %v2831 = vmax.f32 %v2799, 0.0
      %v2832 = vmax.f32 %v2800, 0.0
      %v2833 = vmax.f32 %v2801, 0.0
      %v2834 = vmax.f32 %v2802, 0.0
      %v2835 = vmax.f32 %v2803, 0.0
      %v2836 = vmax.f32 %v2804, 0.0
      %v2837 = vmax.f32 %v2805, 0.0
      %v2838 = vmax.f32 %v2806, 0.0
      %v2839 = vmax.f32 %v2807, 0.0
      %v2840 = vmax.f32 %v2808, 0.0
      %v2841 = vmax.f32 %v2809, 0.0
      %v2842 = vmax.f32 %v2810, 0.0
      %v2843 = vmax.f32 %v2811, 0.0
      %v2844 = vmax.f32 %v2812, 0.0
      %v2845 = vmax.f32 %v2813, 0.0
      %v2846 = vmax.f32 %v2814, 0.0
      %v2847 = vmax.f32 %v2815, 0.0
      %v2848 = vmax.f32 %v2816, 0.0
      %v2849 = vmax.f32 %v2817, 0.0
      %v2850 = vmax.f32 %v2818, 0.0
      %v2851 = vmax.f32 %v2819, 0.0
      %v2852 = vld [vmem:[%s5] sm:$0xff]
      %v2853 = vld [vmem:[%s5 + $0x8] sm:$0xff]
      %v2854 = vld [vmem:[%s6] sm:$0x1]
      %v2856 = vlaneseq
      %v2857 = vshrl.u32 %v2856, 7
      %v2858 = vsub.s32 0, %v2857
      %v2859 = vrot.slane %v2854, %v2858
      %v2862 = vsel %vm673, %v2820, 0
      %v2865 = vsel %vm673, %v2821, 0
      %v2868 = vsel %vm673, %v2822, 0
      %v2871 = vsel %vm673, %v2823, 0
      %v2874 = vsel %vm673, %v2824, 0
      %v2877 = vsel %vm673, %v2825, 0
      %v2880 = vsel %vm673, %v2826, 0
      %v2883 = vsel %vm673, %v2827, 0
      %v2886 = vsel %vm673, %v2828, 0
      %v2889 = vsel %vm673, %v2829, 0
      %v2892 = vsel %vm673, %v2830, 0
      %v2895 = vsel %vm673, %v2831, 0
      %v2898 = vsel %vm673, %v2832, 0
      %v2901 = vsel %vm673, %v2833, 0
      %v2904 = vsel %vm673, %v2834, 0
      %v2907 = vsel %vm673, %v2835, 0
      %v2910 = vsel %vm673, %v2836, 0
      %v2913 = vsel %vm673, %v2837, 0
      %v2916 = vsel %vm673, %v2838, 0
      %v2919 = vsel %vm673, %v2839, 0
      %v2922 = vsel %vm673, %v2840, 0
      %v2925 = vsel %vm673, %v2841, 0
      %v2928 = vsel %vm673, %v2842, 0
      %v2931 = vsel %vm673, %v2843, 0
      %v2934 = vsel %vm673, %v2844, 0
      %v2937 = vsel %vm673, %v2845, 0
      %v2940 = vsel %vm673, %v2846, 0
      %v2943 = vsel %vm673, %v2847, 0
      %v2946 = vsel %vm673, %v2848, 0
      %v2949 = vsel %vm673, %v2849, 0
      %v2952 = vsel %vm673, %v2850, 0
      %v2955 = vsel %vm673, %v2851, 0
      %2957 = vmatprep.subr.mxu0 0.0
      %2958 = vmatpush1.msra.mxu0 %v2852
      %2959 = vmatprep.subr.mxu0 0.0
      %2960 = vmatpush1.msra.mxu0 %v2853
      %2961 = vmatprep.subr.mxu0 0.0
      %2962 = vmatpush1.msra.mxu0 0.0
      %2963 = vmatprep.subr.mxu0 0.0
      %2964 = vmatpush1.msra.mxu0 0.0
      %2965 = vmatprep.subr.mxu0 0.0
      %2966 = vmatpush1.msra.mxu0 0.0
      %2967 = vmatprep.subr.mxu0 0.0
      %2968 = vmatpush1.msra.mxu0 0.0
      %2969 = vmatprep.subr.mxu0 0.0
      %2970 = vmatpush1.msra.mxu0 0.0
      %2971 = vmatprep.subr.mxu0 0.0
      %2972 = vmatpush1.msra.mxu0 0.0
      %2973 = vmatprep.subr.mxu0 0.0
      %2974 = vmatpush1.msra.mxu0 0.0
      %2975 = vmatprep.subr.mxu0 0.0
      %2976 = vmatpush1.msra.mxu0 0.0
      %2977 = vmatprep.subr.mxu0 0.0
      %2978 = vmatpush1.msra.mxu0 0.0
      %2979 = vmatprep.subr.mxu0 0.0
      %2980 = vmatpush1.msra.mxu0 0.0
      %2981 = vmatprep.subr.mxu0 0.0
      %2982 = vmatpush1.msra.mxu0 0.0
      %2983 = vmatprep.subr.mxu0 0.0
      %2984 = vmatpush1.msra.mxu0 0.0
      %2985 = vmatprep.subr.mxu0 0.0
      %2986 = vmatpush1.msra.mxu0 0.0
      %2987 = vmatprep.subr.mxu0 0.0
      %2988 = vmatpush1.msra.mxu0 0.0
      %2989 = vmatprep.subr.mxu0 0.0
      %2990 = vmatpush1.msra.mxu0 0.0
      %2991 = vmatprep.subr.mxu0 0.0
      %2992 = vmatpush1.msra.mxu0 0.0
      %2993 = vmatprep.subr.mxu0 0.0
      %2994 = vmatpush1.msra.mxu0 0.0
      %2995 = vmatprep.subr.mxu0 0.0
      %2996 = vmatpush1.msra.mxu0 0.0
      %2997 = vmatprep.subr.mxu0 0.0
      %2998 = vmatpush1.msra.mxu0 0.0
      %2999 = vmatprep.subr.mxu0 0.0
      %3000 = vmatpush1.msra.mxu0 0.0
      %3001 = vmatprep.subr.mxu0 0.0
      %3002 = vmatpush1.msra.mxu0 0.0
      %3003 = vmatprep.subr.mxu0 0.0
      %3004 = vmatpush1.msra.mxu0 0.0
      %3005 = vmatprep.subr.mxu0 0.0
      %3006 = vmatpush1.msra.mxu0 0.0
      %3007 = vmatprep.subr.mxu0 0.0
      %3008 = vmatpush1.msra.mxu0 0.0
      %3009 = vmatprep.subr.mxu0 0.0
      %3010 = vmatpush1.msra.mxu0 0.0
      %3011 = vmatprep.subr.mxu0 0.0
      %3012 = vmatpush1.msra.mxu0 0.0
      %3013 = vmatprep.subr.mxu0 0.0
      %3014 = vmatpush1.msra.mxu0 0.0
      %3015 = vmatprep.subr.mxu0 0.0
      %3016 = vmatpush1.msra.mxu0 0.0
      %3017 = vmatprep.subr.mxu0 0.0
      %3018 = vmatpush1.msra.mxu0 0.0
      %3019 = vmatprep.subr.mxu0 0.0
      %3020 = vmatpush1.msra.mxu0 0.0
      %3021 = vmatprep.mubr.f32.mxu0 0.0
      %3022 = vmatmul.mubr.f32.gmra.mrb[0].mxu0 %v2862
      %v3023 = vpop.f32.mrb[0].mxu0
      %v3024 = vadd.f32 %v2859, %v3023
      %v3025 = vpop.f32.mrb[0].mxu0
      %3026 = vmatprep.mubr.f32.mxu0 0.0
      %3027 = vmatmul.mubr.f32.gmra.mrb[0].mxu0 %v2865
      %v3028 = vpop.f32.mrb[0].mxu0
      %v3029 = vadd.f32 %v2859, %v3028
      %v3030 = vpop.f32.mrb[0].mxu0
      %3031 = vmatprep.mubr.f32.mxu0 0.0
      %3032 = vmatmul.mubr.f32.gmra.mrb[0].mxu0 %v2868
      %v3033 = vpop.f32.mrb[0].mxu0
      %v3034 = vadd.f32 %v2859, %v3033
      %v3035 = vpop.f32.mrb[0].mxu0
      %3036 = vmatprep.mubr.f32.mxu0 0.0
      %3037 = vmatmul.mubr.f32.gmra.mrb[0].mxu0 %v2871
      %v3038 = vpop.f32.mrb[0].mxu0
      %v3039 = vadd.f32 %v2859, %v3038
      %v3040 = vpop.f32.mrb[0].mxu0
      %3041 = vmatprep.mubr.f32.mxu0 0.0
      %3042 = vmatmul.mubr.f32.gmra.mrb[0].mxu0 %v2874
      %v3043 = vpop.f32.mrb[0].mxu0
      %v3044 = vadd.f32 %v2859, %v3043
      %v3045 = vpop.f32.mrb[0].mxu0
      %3046 = vmatprep.mubr.f32.mxu0 0.0
      %3047 = vmatmul.mubr.f32.gmra.mrb[0].mxu0 %v2877
      %v3048 = vpop.f32.mrb[0].mxu0
      %v3049 = vadd.f32 %v2859, %v3048
      %v3050 = vpop.f32.mrb[0].mxu0
      %3051 = vmatprep.mubr.f32.mxu0 0.0
      %3052 = vmatmul.mubr.f32.gmra.mrb[0].mxu0 %v2880
      %v3053 = vpop.f32.mrb[0].mxu0
      %v3054 = vadd.f32 %v2859, %v3053
      %v3055 = vpop.f32.mrb[0].mxu0
      %3056 = vmatprep.mubr.f32.mxu0 0.0
      %3057 = vmatmul.mubr.f32.gmra.mrb[0].mxu0 %v2883
      %v3058 = vpop.f32.mrb[0].mxu0
      %v3059 = vadd.f32 %v2859, %v3058
      %v3060 = vpop.f32.mrb[0].mxu0
      %3061 = vmatprep.mubr.f32.mxu0 0.0
      %3062 = vmatmul.mubr.f32.gmra.mrb[0].mxu0 %v2886
      %v3063 = vpop.f32.mrb[0].mxu0
      %v3064 = vadd.f32 %v2859, %v3063
      %v3065 = vpop.f32.mrb[0].mxu0
      %3066 = vmatprep.mubr.f32.mxu0 0.0
      %3067 = vmatmul.mubr.f32.gmra.mrb[0].mxu0 %v2889
      %v3068 = vpop.f32.mrb[0].mxu0
      %v3069 = vadd.f32 %v2859, %v3068
      %v3070 = vpop.f32.mrb[0].mxu0
      %3071 = vmatprep.mubr.f32.mxu0 0.0
      %3072 = vmatmul.mubr.f32.gmra.mrb[0].mxu0 %v2892
      %v3073 = vpop.f32.mrb[0].mxu0
      %v3074 = vadd.f32 %v2859, %v3073
      %v3075 = vpop.f32.mrb[0].mxu0
      %3076 = vmatprep.mubr.f32.mxu0 0.0
      %3077 = vmatmul.mubr.f32.gmra.mrb[0].mxu0 %v2895
      %v3078 = vpop.f32.mrb[0].mxu0
      %v3079 = vadd.f32 %v2859, %v3078
      %v3080 = vpop.f32.mrb[0].mxu0
      %3081 = vmatprep.mubr.f32.mxu0 0.0
      %3082 = vmatmul.mubr.f32.gmra.mrb[0].mxu0 %v2898
      %v3083 = vpop.f32.mrb[0].mxu0
      %v3084 = vadd.f32 %v2859, %v3083
      %v3085 = vpop.f32.mrb[0].mxu0
      %3086 = vmatprep.mubr.f32.mxu0 0.0
      %3087 = vmatmul.mubr.f32.gmra.mrb[0].mxu0 %v2901
      %v3088 = vpop.f32.mrb[0].mxu0
      %v3089 = vadd.f32 %v2859, %v3088
      %v3090 = vpop.f32.mrb[0].mxu0
      %3091 = vmatprep.mubr.f32.mxu0 0.0
      %3092 = vmatmul.mubr.f32.gmra.mrb[0].mxu0 %v2904
      %v3093 = vpop.f32.mrb[0].mxu0
      %v3094 = vadd.f32 %v2859, %v3093
      %v3095 = vpop.f32.mrb[0].mxu0
      %3096 = vmatprep.mubr.f32.mxu0 0.0
      %3097 = vmatmul.mubr.f32.gmra.mrb[0].mxu0 %v2907
      %v3098 = vpop.f32.mrb[0].mxu0
      %v3099 = vadd.f32 %v2859, %v3098
      %v3100 = vpop.f32.mrb[0].mxu0
      %3101 = vmatprep.mubr.f32.mxu0 0.0
      %3102 = vmatmul.mubr.f32.gmra.mrb[0].mxu0 %v2910
      %v3103 = vpop.f32.mrb[0].mxu0
      %v3104 = vadd.f32 %v2859, %v3103
      %v3105 = vpop.f32.mrb[0].mxu0
      %3106 = vmatprep.mubr.f32.mxu0 0.0
      %3107 = vmatmul.mubr.f32.gmra.mrb[0].mxu0 %v2913
      %v3108 = vpop.f32.mrb[0].mxu0
      %v3109 = vadd.f32 %v2859, %v3108
      %v3110 = vpop.f32.mrb[0].mxu0
      %3111 = vmatprep.mubr.f32.mxu0 0.0
      %3112 = vmatmul.mubr.f32.gmra.mrb[0].mxu0 %v2916
      %v3113 = vpop.f32.mrb[0].mxu0
      %v3114 = vadd.f32 %v2859, %v3113
      %v3115 = vpop.f32.mrb[0].mxu0
      %3116 = vmatprep.mubr.f32.mxu0 0.0
      %3117 = vmatmul.mubr.f32.gmra.mrb[0].mxu0 %v2919
      %v3118 = vpop.f32.mrb[0].mxu0
      %v3119 = vadd.f32 %v2859, %v3118
      %v3120 = vpop.f32.mrb[0].mxu0
      %3121 = vmatprep.mubr.f32.mxu0 0.0
      %3122 = vmatmul.mubr.f32.gmra.mrb[0].mxu0 %v2922
      %v3123 = vpop.f32.mrb[0].mxu0
      %v3124 = vadd.f32 %v2859, %v3123
      %v3125 = vpop.f32.mrb[0].mxu0
      %3126 = vmatprep.mubr.f32.mxu0 0.0
      %3127 = vmatmul.mubr.f32.gmra.mrb[0].mxu0 %v2925
      %v3128 = vpop.f32.mrb[0].mxu0
      %v3129 = vadd.f32 %v2859, %v3128
      %v3130 = vpop.f32.mrb[0].mxu0
      %3131 = vmatprep.mubr.f32.mxu0 0.0
      %3132 = vmatmul.mubr.f32.gmra.mrb[0].mxu0 %v2928
      %v3133 = vpop.f32.mrb[0].mxu0
      %v3134 = vadd.f32 %v2859, %v3133
      %v3135 = vpop.f32.mrb[0].mxu0
      %3136 = vmatprep.mubr.f32.mxu0 0.0
      %3137 = vmatmul.mubr.f32.gmra.mrb[0].mxu0 %v2931
      %v3138 = vpop.f32.mrb[0].mxu0
      %v3139 = vadd.f32 %v2859, %v3138
      %v3140 = vpop.f32.mrb[0].mxu0
      %3141 = vmatprep.mubr.f32.mxu0 0.0
      %3142 = vmatmul.mubr.f32.gmra.mrb[0].mxu0 %v2934
      %v3143 = vpop.f32.mrb[0].mxu0
      %v3144 = vadd.f32 %v2859, %v3143
      %v3145 = vpop.f32.mrb[0].mxu0
      %3146 = vmatprep.mubr.f32.mxu0 0.0
      %3147 = vmatmul.mubr.f32.gmra.mrb[0].mxu0 %v2937
      %v3148 = vpop.f32.mrb[0].mxu0
      %v3149 = vadd.f32 %v2859, %v3148
      %v3150 = vpop.f32.mrb[0].mxu0
      %3151 = vmatprep.mubr.f32.mxu0 0.0
      %3152 = vmatmul.mubr.f32.gmra.mrb[0].mxu0 %v2940
      %v3153 = vpop.f32.mrb[0].mxu0
      %v3154 = vadd.f32 %v2859, %v3153
      %v3155 = vpop.f32.mrb[0].mxu0
      %3156 = vmatprep.mubr.f32.mxu0 0.0
      %3157 = vmatmul.mubr.f32.gmra.mrb[0].mxu0 %v2943
      %v3158 = vpop.f32.mrb[0].mxu0
      %v3159 = vadd.f32 %v2859, %v3158
      %v3160 = vpop.f32.mrb[0].mxu0
      %3161 = vmatprep.mubr.f32.mxu0 0.0
      %3162 = vmatmul.mubr.f32.gmra.mrb[0].mxu0 %v2946
      %v3163 = vpop.f32.mrb[0].mxu0
      %v3164 = vadd.f32 %v2859, %v3163
      %v3165 = vpop.f32.mrb[0].mxu0
      %3166 = vmatprep.mubr.f32.mxu0 0.0
      %3167 = vmatmul.mubr.f32.gmra.mrb[0].mxu0 %v2949
      %v3168 = vpop.f32.mrb[0].mxu0
      %v3169 = vadd.f32 %v2859, %v3168
      %v3170 = vpop.f32.mrb[0].mxu0
      %3171 = vmatprep.mubr.f32.mxu0 0.0
      %3172 = vmatmul.mubr.f32.gmra.mrb[0].mxu0 %v2952
      %v3173 = vpop.f32.mrb[0].mxu0
      %v3174 = vadd.f32 %v2859, %v3173
      %v3175 = vpop.f32.mrb[0].mxu0
      %3176 = vmatprep.mubr.f32.mxu0 0.0
      %3177 = vmatmul.mubr.f32.gmra.mrb[0].mxu0 %v2955
      %v3178 = vpop.f32.mrb[0].mxu0
      %v3179 = vadd.f32 %v2859, %v3178
      %v3180 = vpop.f32.mrb[0].mxu0
      %3181 = vdwg.mxu0
      %v3182 = vadd.f32 %v3024, %v279
      %v3183 = vadd.f32 %v3029, %v280
      %v3184 = vadd.f32 %v3034, %v281
      %v3185 = vadd.f32 %v3039, %v282
      %v3186 = vadd.f32 %v3044, %v283
      %v3187 = vadd.f32 %v3049, %v284
      %v3188 = vadd.f32 %v3054, %v285
      %v3189 = vadd.f32 %v3059, %v286
      %v3190 = vadd.f32 %v3064, %v287
      %v3191 = vadd.f32 %v3069, %v288
      %v3192 = vadd.f32 %v3074, %v289
      %v3193 = vadd.f32 %v3079, %v290
      %v3194 = vadd.f32 %v3084, %v291
      %v3195 = vadd.f32 %v3089, %v292
      %v3196 = vadd.f32 %v3094, %v293
      %v3197 = vadd.f32 %v3099, %v294
      %v3198 = vadd.f32 %v3104, %v295
      %v3199 = vadd.f32 %v3109, %v296
      %v3200 = vadd.f32 %v3114, %v297
      %v3201 = vadd.f32 %v3119, %v298
      %v3202 = vadd.f32 %v3124, %v299
      %v3203 = vadd.f32 %v3129, %v300
      %v3204 = vadd.f32 %v3134, %v301
      %v3205 = vadd.f32 %v3139, %v302
      %v3206 = vadd.f32 %v3144, %v303
      %v3207 = vadd.f32 %v3149, %v304
      %v3208 = vadd.f32 %v3154, %v305
      %v3209 = vadd.f32 %v3159, %v306
      %v3210 = vadd.f32 %v3164, %v307
      %v3211 = vadd.f32 %v3169, %v308
      %v3212 = vadd.f32 %v3174, %v309
      %v3213 = vadd.f32 %v3179, %v310
      %3214 = vst.msk [vmem:[%s278] sm:$0xff] %vm319, %v3182
      %3215 = vst.msk [vmem:[%s278 + $0x8] sm:$0xff] %vm319, %v3183
      %3216 = vst.msk [vmem:[%s278 + $0x10] sm:$0xff] %vm319, %v3184
      %3217 = vst.msk [vmem:[%s278 + $0x18] sm:$0xff] %vm319, %v3185
      %3218 = vst.msk [vmem:[%s278 + $0x20] sm:$0xff] %vm319, %v3186
      %3219 = vst.msk [vmem:[%s278 + $0x28] sm:$0xff] %vm319, %v3187
      %3220 = vst.msk [vmem:[%s278 + $0x30] sm:$0xff] %vm319, %v3188
      %3221 = vst.msk [vmem:[%s278 + $0x38] sm:$0xff] %vm319, %v3189
      %3222 = vst.msk [vmem:[%s278 + $0x40] sm:$0xff] %vm319, %v3190
      %3223 = vst.msk [vmem:[%s278 + $0x48] sm:$0xff] %vm319, %v3191
      %3224 = vst.msk [vmem:[%s278 + $0x50] sm:$0xff] %vm319, %v3192
      %3225 = vst.msk [vmem:[%s278 + $0x58] sm:$0xff] %vm319, %v3193
      %3226 = vst.msk [vmem:[%s278 + $0x60] sm:$0xff] %vm319, %v3194
      %3227 = vst.msk [vmem:[%s278 + $0x68] sm:$0xff] %vm319, %v3195
      %3228 = vst.msk [vmem:[%s278 + $0x70] sm:$0xff] %vm319, %v3196
      %3229 = vst.msk [vmem:[%s278 + $0x78] sm:$0xff] %vm319, %v3197
      %3230 = vst.msk [vmem:[%s278 + $0x80] sm:$0xff] %vm319, %v3198
      %3231 = vst.msk [vmem:[%s278 + $0x88] sm:$0xff] %vm319, %v3199
      %3232 = vst.msk [vmem:[%s278 + $0x90] sm:$0xff] %vm319, %v3200
      %3233 = vst.msk [vmem:[%s278 + $0x98] sm:$0xff] %vm319, %v3201
      %3234 = vst.msk [vmem:[%s278 + $0xa0] sm:$0xff] %vm319, %v3202
      %3235 = vst.msk [vmem:[%s278 + $0xa8] sm:$0xff] %vm319, %v3203
      %3236 = vst.msk [vmem:[%s278 + $0xb0] sm:$0xff] %vm319, %v3204
      %3237 = vst.msk [vmem:[%s278 + $0xb8] sm:$0xff] %vm319, %v3205
      %3238 = vst.msk [vmem:[%s278 + $0xc0] sm:$0xff] %vm319, %v3206
      %3239 = vst.msk [vmem:[%s278 + $0xc8] sm:$0xff] %vm319, %v3207
      %3240 = vst.msk [vmem:[%s278 + $0xd0] sm:$0xff] %vm319, %v3208
      %3241 = vst.msk [vmem:[%s278 + $0xd8] sm:$0xff] %vm319, %v3209
      %3242 = vst.msk [vmem:[%s278 + $0xe0] sm:$0xff] %vm319, %v3210
      %3243 = vst.msk [vmem:[%s278 + $0xe8] sm:$0xff] %vm319, %v3211
      %3244 = vst.msk [vmem:[%s278 + $0xf0] sm:$0xff] %vm319, %v3212
      %3245 = vst.msk [vmem:[%s278 + $0xf8] sm:$0xff] %vm319, %v3213
      %p3246 = scmp.lt.s32.totalorder %s18, 1
      %s3247 = scalar_select %p3246, %s18, 1
      %s3248 = smul.addr %s3247, 32
      %s3249 = smul.addr %s3248, 8
      %s3250 = scalar_lea.vmem %s7, %s3249
      // Predicated region
      $region49: #{tpu_custom_call.1} parent=47 // pred_check
        %p3251 = pneg %p188
      $region50: #{tpu_custom_call.1} parent=47 // pred_check_branch
        %3253 = sbr.rel (%p3251) target = $region52
      $region51: #{tpu_custom_call.1} parent=47 // pred_region
        _
      $region52: #{tpu_custom_call.1} parent=47 // pred_fallthru
        _
    $region48: #{tpu_custom_call.1} parent=5 // pred_fallthru
      _
    %p3254 = scmp.le.s32.totalorder 2, %s13
    // Predicated region
    $region53: #{tpu_custom_call.1} parent=5 // pred_check
      %p3255 = pneg %p3254
    $region54: #{tpu_custom_call.1} parent=5 // pred_check_branch
      %3257 = sbr.rel (%p3255) target = $region56
    $region55: #{tpu_custom_call.1} parent=5 // pred_region
      %s3258 = ssub.s32 %s13, 2
      // Predicated region
      $region57: #{tpu_custom_call.1} parent=55 // pred_check
        %p3259 = pneg %p194
      $region58: #{tpu_custom_call.1} parent=55 // pred_check_branch
        %3261 = sbr.rel (%p3259) target = $region60
      $region59: #{tpu_custom_call.1} parent=55 // pred_region
        %p3262 = scmp.lt.s32.totalorder %s19, 1
        %s3263 = scalar_select %p3262, %s19, 1
        %s3264 = smul.addr %s3263, 32
        %s3265 = smul.addr %s3264, 8
        %s3266 = scalar_lea.vmem %s7, %s3265
      $region60: #{tpu_custom_call.1} parent=55 // pred_fallthru
        _
    $region56: #{tpu_custom_call.1} parent=5 // pred_fallthru
      _
  $region6: #{tpu_custom_call.1} parent=0 // loop_footer
    %s17 = sadd.s32 1, %s13
  $region7: #{tpu_custom_call.1} parent=0 // loop_footer_branch
    %12 = sbr.rel target = $region3
  $region8: #{tpu_custom_call.1} parent=0 // loop_exit
    _

</llo_original>
